<compile_context>
chip_gen: v6e
topology: v6e:2x2x1
jax: 0.10.0
libtpu: 0.0.40
codegen_flags: <defaults>
</compile_context>

<pallas_src>
import functools

import jax
import jax.numpy as jnp
from jax.experimental import pallas as pl
from jax.experimental.pallas import tpu as pltpu

# k_size -> (k0, ks, dilation), matching the PyTorch constructor table.
LSKA_CFG = {
    7:  (3, 3, 2),
    11: (3, 5, 2),
    23: (5, 7, 3),
    35: (5, 11, 3),
    41: (5, 13, 3),
    53: (5, 17, 3),
}


# ---------------------------------------------------------------------------
# In-kernel helpers (traced inside the Pallas kernel; everything stays in VMEM)
# ---------------------------------------------------------------------------
def _dw_along_w(a, w, b, k, dil):
    """Depthwise 1xk conv along W (axis 1). a:[H,W,C] f32, w:[k,C], b:[C]."""
    H, W, C = a.shape
    pad = (k - 1) * dil // 2
    if pad > 0:
        z = jnp.zeros((H, pad, C), jnp.float32)
        ap = jnp.concatenate([z, a, z], axis=1)      # VMEM-only padded copy
    else:
        ap = a
    acc = ap[:, 0:W, :] * w[0] + b                   # fold bias into tap 0
    for i in range(1, k):                            # unrolled at trace time
        acc = acc + ap[:, i * dil:i * dil + W, :] * w[i]
    return acc


def _dw_along_h(a, w, b, k, dil):
    """Depthwise kx1 conv along H (axis 0). a:[H,W,C] f32, w:[k,C], b:[C]."""
    H, W, C = a.shape
    pad = (k - 1) * dil // 2
    if pad > 0:
        z = jnp.zeros((pad, W, C), jnp.float32)
        ap = jnp.concatenate([z, a, z], axis=0)
    else:
        ap = a
    acc = ap[0:H, :, :] * w[0] + b
    for i in range(1, k):
        acc = acc + ap[i * dil:i * dil + H, :, :] * w[i]
    return acc


def _lska_kernel(k0, ks, dil,
                 x_ref, w0h_ref, b0h_ref, w0v_ref, b0v_ref,
                 wsh_ref, bsh_ref, wsv_ref, bsv_ref, w1_ref, b1_ref,
                 o_ref):
    x = x_ref[0].astype(jnp.float32)                 # [H, W, C]
    H, W, C = x.shape

    attn = _dw_along_w(x,    w0h_ref[...].astype(jnp.float32), b0h_ref[0], k0, 1)
    attn = _dw_along_h(attn, w0v_ref[...].astype(jnp.float32), b0v_ref[0], k0, 1)
    attn = _dw_along_w(attn, wsh_ref[...].astype(jnp.float32), bsh_ref[0], ks, dil)
    attn = _dw_along_h(attn, wsv_ref[...].astype(jnp.float32), bsv_ref[0], ks, dil)

    # 1x1 conv on the MXU (f32 accumulation), then gate the residual input.
    y = jnp.dot(attn.reshape(H * W, C), w1_ref[...].astype(jnp.float32),
                preferred_element_type=jnp.float32) + b1_ref[...]
    o_ref[0] = (y.reshape(H, W, C) * x).astype(o_ref.dtype)


# ---------------------------------------------------------------------------
# Wrapper: NCHW in / NCHW out, grid over batch
# ---------------------------------------------------------------------------
def lska_forward(params, x_nchw, k_size):
    k0, ks, dil = LSKA_CFG[k_size]
    x = jnp.transpose(x_nchw, (0, 2, 3, 1))          # NCHW -> NHWC (C = lane dim)
    B, H, W, C = x.shape

    names = ("w0h", "b0h", "w0v", "b0v", "wsh", "bsh", "wsv", "bsv", "w1", "b1")
    operands = [x] + [params[n] for n in names]

    in_specs = [pl.BlockSpec((1, H, W, C), lambda b: (b, 0, 0, 0))]
    for n in names:
        # Small 2-D weight/bias tensors: full-array blocks, same block index every grid
        # step, so they stay resident in VMEM across the batch loop.
        in_specs.append(pl.BlockSpec(params[n].shape, lambda b: (0, 0)))

    out = pl.pallas_call(
        functools.partial(_lska_kernel, k0, ks, dil),
        out_shape=jax.ShapeDtypeStruct((B, H, W, C), x.dtype),
        grid=(B,),
        in_specs=in_specs,
        out_specs=pl.BlockSpec((1, H, W, C), lambda b: (b, 0, 0, 0)),
        compiler_params=pltpu.CompilerParams(
            dimension_semantics=("parallel",)),
    )(*operands)
    return jnp.transpose(out, (0, 3, 1, 2))          # NHWC -> NCHW


# ---------------------------------------------------------------------------
# Deterministic synthetic parameters
# ---------------------------------------------------------------------------
def init_lska_params(key, dim, k_size):
    k0, ks, _ = LSKA_CFG[k_size]
    kk = jax.random.split(key, 10)

    def w(k_, shape):
        return 0.2 * jax.random.normal(k_, shape, jnp.float32)

    def b(k_, c):
        return 0.1 * jax.random.normal(k_, (1, c), jnp.float32)

    return {
        "w0h": w(kk[0], (k0, dim)), "b0h": b(kk[1], dim),
        "w0v": w(kk[2], (k0, dim)), "b0v": b(kk[3], dim),
        "wsh": w(kk[4], (ks, dim)), "bsh": b(kk[5], dim),
        "wsv": w(kk[6], (ks, dim)), "bsv": b(kk[7], dim),
        "w1":  w(kk[8], (dim, dim)), "b1": b(kk[9], dim),
    }


# ---------------------------------------------------------------------------
# Pure-JAX reference (lax.conv_general_dilated) for a correctness check
# ---------------------------------------------------------------------------
def lska_reference(params, x_nchw, k_size):
    k0, ks, dil = LSKA_CFG[k_size]
    x = jnp.transpose(x_nchw, (0, 2, 3, 1))          # NHWC

    def dw(a, w, b, horizontal, k, d):
        C = a.shape[-1]
        pad = (k - 1) * d // 2
        if horizontal:
            rhs = w[None, :, None, :]                # [1, k, 1, C] (HWIO)
            padding = ((0, 0), (pad, pad))
            rhs_dil = (1, d)
        else:
            rhs = w[:, None, None, :]                # [k, 1, 1, C]
            padding = ((pad, pad), (0, 0))
            rhs_dil = (d, 1)
        y = jax.lax.conv_general_dilated(
            a, rhs, window_strides=(1, 1), padding=padding,
            rhs_dilation=rhs_dil,
            dimension_numbers=("NHWC", "HWIO", "NHWC"),
            feature_group_count=C)
        return y + b[0]

    attn = dw(x,    params["w0h"], params["b0h"], True,  k0, 1)
    attn = dw(attn, params["w0v"], params["b0v"], False, k0, 1)
    attn = dw(attn, params["wsh"], params["bsh"], True,  ks, dil)
    attn = dw(attn, params["wsv"], params["bsv"], False, ks, dil)
    attn = jnp.einsum("bhwc,cd->bhwd", attn, params["w1"]) + params["b1"][0]
    return jnp.transpose(x * attn, (0, 3, 1, 2))


# ---------------------------------------------------------------------------
if __name__ == "__main__":
    key = jax.random.PRNGKey(0)

    B, DIM, H, W = 2, 128, 16, 16
    for K_SIZE in (7, 23):                           # small-kernel + dilated-large config
        kx, kp = jax.random.split(jax.random.fold_in(key, K_SIZE))
        x = jax.random.normal(kx, (B, DIM, H, W), jnp.float32)   # NCHW, like PyTorch
        params = init_lska_params(kp, DIM, K_SIZE)

        out = lska_forward(params, x, K_SIZE)
        jax.block_until_ready(out)
        assert out.shape == (B, DIM, H, W)

        ref = lska_reference(params, x, K_SIZE)
        err = float(jnp.max(jnp.abs(out - ref)))
        assert err < 5e-4, f"k_size={K_SIZE}: mismatch vs reference: {err}"

    print("KERNEL_OK")
</pallas_src>

<mosaic_0001>
module attributes {stable_mosaic.version = 11 : i64} {
  func.func @_lska_kernel(%arg0: i32, %arg1: memref<1x16x16x128xf32, #tpu.memory_space<vmem>>, %arg2: memref<3x128xf32, #tpu.memory_space<vmem>>, %arg3: memref<1x128xf32, #tpu.memory_space<vmem>>, %arg4: memref<3x128xf32, #tpu.memory_space<vmem>>, %arg5: memref<1x128xf32, #tpu.memory_space<vmem>>, %arg6: memref<3x128xf32, #tpu.memory_space<vmem>>, %arg7: memref<1x128xf32, #tpu.memory_space<vmem>>, %arg8: memref<3x128xf32, #tpu.memory_space<vmem>>, %arg9: memref<1x128xf32, #tpu.memory_space<vmem>>, %arg10: memref<128x128xf32, #tpu.memory_space<vmem>>, %arg11: memref<1x128xf32, #tpu.memory_space<vmem>>, %arg12: memref<1x16x16x128xf32, #tpu.memory_space<vmem>>) attributes {dimension_semantics = [#tpu.dimension_semantics<parallel>], iteration_bounds = array<i64: 2>, scalar_prefetch = 0 : i64, scratch_operands = 0 : i64, tpu.core_type = #tpu.core_type<tc>, window_params = [{transform_indices = @transform_0, window_bounds = array<i64: 1, 16, 16, 128>}, {pipeline_mode = #tpu.pipeline_mode<synchronous>, transform_indices = @transform_1, window_bounds = array<i64: 3, 128>}, {pipeline_mode = #tpu.pipeline_mode<synchronous>, transform_indices = @transform_2, window_bounds = array<i64: 1, 128>}, {pipeline_mode = #tpu.pipeline_mode<synchronous>, transform_indices = @transform_3, window_bounds = array<i64: 3, 128>}, {pipeline_mode = #tpu.pipeline_mode<synchronous>, transform_indices = @transform_4, window_bounds = array<i64: 1, 128>}, {pipeline_mode = #tpu.pipeline_mode<synchronous>, transform_indices = @transform_5, window_bounds = array<i64: 3, 128>}, {pipeline_mode = #tpu.pipeline_mode<synchronous>, transform_indices = @transform_6, window_bounds = array<i64: 1, 128>}, {pipeline_mode = #tpu.pipeline_mode<synchronous>, transform_indices = @transform_7, window_bounds = array<i64: 3, 128>}, {pipeline_mode = #tpu.pipeline_mode<synchronous>, transform_indices = @transform_8, window_bounds = array<i64: 1, 128>}, {pipeline_mode = #tpu.pipeline_mode<synchronous>, transform_indices = @transform_9, window_bounds = array<i64: 128, 128>}, {pipeline_mode = #tpu.pipeline_mode<synchronous>, transform_indices = @transform_10, window_bounds = array<i64: 1, 128>}, {transform_indices = @transform_11, window_bounds = array<i64: 1, 16, 16, 128>}]} {
    %c0 = arith.constant 0 : index
    %c0_0 = arith.constant 0 : index
    %c0_1 = arith.constant 0 : index
    %c0_2 = arith.constant 0 : index
    %0 = vector.load %arg1[%c0, %c0_0, %c0_1, %c0_2] : memref<1x16x16x128xf32, #tpu.memory_space<vmem>>, vector<1x16x16x128xf32>
    %1 = vector.shape_cast %0 : vector<1x16x16x128xf32> to vector<16x16x128xf32>
    %c0_3 = arith.constant 0 : index
    %c0_4 = arith.constant 0 : index
    %2 = vector.load %arg2[%c0_3, %c0_4] : memref<3x128xf32, #tpu.memory_space<vmem>>, vector<3x128xf32>
    %c0_5 = arith.constant 0 : index
    %c0_6 = arith.constant 0 : index
    %3 = vector.load %arg3[%c0_5, %c0_6] : memref<1x128xf32, #tpu.memory_space<vmem>>, vector<1x128xf32>
    %4 = vector.shape_cast %3 : vector<1x128xf32> to vector<128xf32>
    %cst = arith.constant 0.000000e+00 : f32
    %5 = vector.broadcast %cst : f32 to vector<16x1x128xf32>
    %6 = tpu.concatenate %5, %1, %5 in 1 : vector<16x1x128xf32>, vector<16x16x128xf32>, vector<16x1x128xf32> -> vector<16x18x128xf32>
    %7 = vector.extract_strided_slice %6 {offsets = [0, 0, 0], sizes = [16, 16, 128], strides = [1, 1, 1]} : vector<16x18x128xf32> to vector<16x16x128xf32>
    %8 = vector.extract_strided_slice %2 {offsets = [0, 0], sizes = [1, 128], strides = [1, 1]} : vector<3x128xf32> to vector<1x128xf32>
    %9 = vector.shape_cast %8 : vector<1x128xf32> to vector<128xf32>
    %10 = vector.shape_cast %9 : vector<128xf32> to vector<1x1x128xf32>
    %11 = vector.broadcast %10 : vector<1x1x128xf32> to vector<16x16x128xf32>
    %12 = arith.mulf %7, %11 : vector<16x16x128xf32>
    %13 = vector.shape_cast %4 : vector<128xf32> to vector<1x1x128xf32>
    %14 = vector.broadcast %13 : vector<1x1x128xf32> to vector<16x16x128xf32>
    %15 = arith.addf %12, %14 : vector<16x16x128xf32>
    %16 = vector.extract_strided_slice %6 {offsets = [0, 1, 0], sizes = [16, 16, 128], strides = [1, 1, 1]} : vector<16x18x128xf32> to vector<16x16x128xf32>
    %17 = vector.extract_strided_slice %2 {offsets = [1, 0], sizes = [1, 128], strides = [1, 1]} : vector<3x128xf32> to vector<1x128xf32>
    %18 = vector.shape_cast %17 : vector<1x128xf32> to vector<128xf32>
    %19 = vector.shape_cast %18 : vector<128xf32> to vector<1x1x128xf32>
    %20 = vector.broadcast %19 : vector<1x1x128xf32> to vector<16x16x128xf32>
    %21 = arith.mulf %16, %20 : vector<16x16x128xf32>
    %22 = arith.addf %15, %21 : vector<16x16x128xf32>
    %23 = vector.extract_strided_slice %6 {offsets = [0, 2, 0], sizes = [16, 16, 128], strides = [1, 1, 1]} : vector<16x18x128xf32> to vector<16x16x128xf32>
    %24 = vector.extract_strided_slice %2 {offsets = [2, 0], sizes = [1, 128], strides = [1, 1]} : vector<3x128xf32> to vector<1x128xf32>
    %25 = vector.shape_cast %24 : vector<1x128xf32> to vector<128xf32>
    %26 = vector.shape_cast %25 : vector<128xf32> to vector<1x1x128xf32>
    %27 = vector.broadcast %26 : vector<1x1x128xf32> to vector<16x16x128xf32>
    %28 = arith.mulf %23, %27 : vector<16x16x128xf32>
    %29 = arith.addf %22, %28 : vector<16x16x128xf32>
    %c0_7 = arith.constant 0 : index
    %c0_8 = arith.constant 0 : index
    %30 = vector.load %arg4[%c0_7, %c0_8] : memref<3x128xf32, #tpu.memory_space<vmem>>, vector<3x128xf32>
    %c0_9 = arith.constant 0 : index
    %c0_10 = arith.constant 0 : index
    %31 = vector.load %arg5[%c0_9, %c0_10] : memref<1x128xf32, #tpu.memory_space<vmem>>, vector<1x128xf32>
    %32 = vector.shape_cast %31 : vector<1x128xf32> to vector<128xf32>
    %cst_11 = arith.constant 0.000000e+00 : f32
    %33 = vector.broadcast %cst_11 : f32 to vector<1x16x128xf32>
    %34 = tpu.concatenate %33, %29, %33 in 0 : vector<1x16x128xf32>, vector<16x16x128xf32>, vector<1x16x128xf32> -> vector<18x16x128xf32>
    %35 = vector.extract_strided_slice %34 {offsets = [0, 0, 0], sizes = [16, 16, 128], strides = [1, 1, 1]} : vector<18x16x128xf32> to vector<16x16x128xf32>
    %36 = vector.extract_strided_slice %30 {offsets = [0, 0], sizes = [1, 128], strides = [1, 1]} : vector<3x128xf32> to vector<1x128xf32>
    %37 = vector.shape_cast %36 : vector<1x128xf32> to vector<128xf32>
    %38 = vector.shape_cast %37 : vector<128xf32> to vector<1x1x128xf32>
    %39 = vector.broadcast %38 : vector<1x1x128xf32> to vector<16x16x128xf32>
    %40 = arith.mulf %35, %39 : vector<16x16x128xf32>
    %41 = vector.shape_cast %32 : vector<128xf32> to vector<1x1x128xf32>
    %42 = vector.broadcast %41 : vector<1x1x128xf32> to vector<16x16x128xf32>
    %43 = arith.addf %40, %42 : vector<16x16x128xf32>
    %44 = vector.extract_strided_slice %34 {offsets = [1, 0, 0], sizes = [16, 16, 128], strides = [1, 1, 1]} : vector<18x16x128xf32> to vector<16x16x128xf32>
    %45 = vector.extract_strided_slice %30 {offsets = [1, 0], sizes = [1, 128], strides = [1, 1]} : vector<3x128xf32> to vector<1x128xf32>
    %46 = vector.shape_cast %45 : vector<1x128xf32> to vector<128xf32>
    %47 = vector.shape_cast %46 : vector<128xf32> to vector<1x1x128xf32>
    %48 = vector.broadcast %47 : vector<1x1x128xf32> to vector<16x16x128xf32>
    %49 = arith.mulf %44, %48 : vector<16x16x128xf32>
    %50 = arith.addf %43, %49 : vector<16x16x128xf32>
    %51 = vector.extract_strided_slice %34 {offsets = [2, 0, 0], sizes = [16, 16, 128], strides = [1, 1, 1]} : vector<18x16x128xf32> to vector<16x16x128xf32>
    %52 = vector.extract_strided_slice %30 {offsets = [2, 0], sizes = [1, 128], strides = [1, 1]} : vector<3x128xf32> to vector<1x128xf32>
    %53 = vector.shape_cast %52 : vector<1x128xf32> to vector<128xf32>
    %54 = vector.shape_cast %53 : vector<128xf32> to vector<1x1x128xf32>
    %55 = vector.broadcast %54 : vector<1x1x128xf32> to vector<16x16x128xf32>
    %56 = arith.mulf %51, %55 : vector<16x16x128xf32>
    %57 = arith.addf %50, %56 : vector<16x16x128xf32>
    %c0_12 = arith.constant 0 : index
    %c0_13 = arith.constant 0 : index
    %58 = vector.load %arg6[%c0_12, %c0_13] : memref<3x128xf32, #tpu.memory_space<vmem>>, vector<3x128xf32>
    %c0_14 = arith.constant 0 : index
    %c0_15 = arith.constant 0 : index
    %59 = vector.load %arg7[%c0_14, %c0_15] : memref<1x128xf32, #tpu.memory_space<vmem>>, vector<1x128xf32>
    %60 = vector.shape_cast %59 : vector<1x128xf32> to vector<128xf32>
    %cst_16 = arith.constant 0.000000e+00 : f32
    %61 = vector.broadcast %cst_16 : f32 to vector<16x2x128xf32>
    %62 = tpu.concatenate %61, %57, %61 in 1 : vector<16x2x128xf32>, vector<16x16x128xf32>, vector<16x2x128xf32> -> vector<16x20x128xf32>
    %63 = vector.extract_strided_slice %62 {offsets = [0, 0, 0], sizes = [16, 16, 128], strides = [1, 1, 1]} : vector<16x20x128xf32> to vector<16x16x128xf32>
    %64 = vector.extract_strided_slice %58 {offsets = [0, 0], sizes = [1, 128], strides = [1, 1]} : vector<3x128xf32> to vector<1x128xf32>
    %65 = vector.shape_cast %64 : vector<1x128xf32> to vector<128xf32>
    %66 = vector.shape_cast %65 : vector<128xf32> to vector<1x1x128xf32>
    %67 = vector.broadcast %66 : vector<1x1x128xf32> to vector<16x16x128xf32>
    %68 = arith.mulf %63, %67 : vector<16x16x128xf32>
    %69 = vector.shape_cast %60 : vector<128xf32> to vector<1x1x128xf32>
    %70 = vector.broadcast %69 : vector<1x1x128xf32> to vector<16x16x128xf32>
    %71 = arith.addf %68, %70 : vector<16x16x128xf32>
    %72 = vector.extract_strided_slice %62 {offsets = [0, 2, 0], sizes = [16, 16, 128], strides = [1, 1, 1]} : vector<16x20x128xf32> to vector<16x16x128xf32>
    %73 = vector.extract_strided_slice %58 {offsets = [1, 0], sizes = [1, 128], strides = [1, 1]} : vector<3x128xf32> to vector<1x128xf32>
    %74 = vector.shape_cast %73 : vector<1x128xf32> to vector<128xf32>
    %75 = vector.shape_cast %74 : vector<128xf32> to vector<1x1x128xf32>
    %76 = vector.broadcast %75 : vector<1x1x128xf32> to vector<16x16x128xf32>
    %77 = arith.mulf %72, %76 : vector<16x16x128xf32>
    %78 = arith.addf %71, %77 : vector<16x16x128xf32>
    %79 = vector.extract_strided_slice %62 {offsets = [0, 4, 0], sizes = [16, 16, 128], strides = [1, 1, 1]} : vector<16x20x128xf32> to vector<16x16x128xf32>
    %80 = vector.extract_strided_slice %58 {offsets = [2, 0], sizes = [1, 128], strides = [1, 1]} : vector<3x128xf32> to vector<1x128xf32>
    %81 = vector.shape_cast %80 : vector<1x128xf32> to vector<128xf32>
    %82 = vector.shape_cast %81 : vector<128xf32> to vector<1x1x128xf32>
    %83 = vector.broadcast %82 : vector<1x1x128xf32> to vector<16x16x128xf32>
    %84 = arith.mulf %79, %83 : vector<16x16x128xf32>
    %85 = arith.addf %78, %84 : vector<16x16x128xf32>
    %c0_17 = arith.constant 0 : index
    %c0_18 = arith.constant 0 : index
    %86 = vector.load %arg8[%c0_17, %c0_18] : memref<3x128xf32, #tpu.memory_space<vmem>>, vector<3x128xf32>
    %c0_19 = arith.constant 0 : index
    %c0_20 = arith.constant 0 : index
    %87 = vector.load %arg9[%c0_19, %c0_20] : memref<1x128xf32, #tpu.memory_space<vmem>>, vector<1x128xf32>
    %88 = vector.shape_cast %87 : vector<1x128xf32> to vector<128xf32>
    %cst_21 = arith.constant 0.000000e+00 : f32
    %89 = vector.broadcast %cst_21 : f32 to vector<2x16x128xf32>
    %90 = tpu.concatenate %89, %85, %89 in 0 : vector<2x16x128xf32>, vector<16x16x128xf32>, vector<2x16x128xf32> -> vector<20x16x128xf32>
    %91 = vector.extract_strided_slice %90 {offsets = [0, 0, 0], sizes = [16, 16, 128], strides = [1, 1, 1]} : vector<20x16x128xf32> to vector<16x16x128xf32>
    %92 = vector.extract_strided_slice %86 {offsets = [0, 0], sizes = [1, 128], strides = [1, 1]} : vector<3x128xf32> to vector<1x128xf32>
    %93 = vector.shape_cast %92 : vector<1x128xf32> to vector<128xf32>
    %94 = vector.shape_cast %93 : vector<128xf32> to vector<1x1x128xf32>
    %95 = vector.broadcast %94 : vector<1x1x128xf32> to vector<16x16x128xf32>
    %96 = arith.mulf %91, %95 : vector<16x16x128xf32>
    %97 = vector.shape_cast %88 : vector<128xf32> to vector<1x1x128xf32>
    %98 = vector.broadcast %97 : vector<1x1x128xf32> to vector<16x16x128xf32>
    %99 = arith.addf %96, %98 : vector<16x16x128xf32>
    %100 = vector.extract_strided_slice %90 {offsets = [2, 0, 0], sizes = [16, 16, 128], strides = [1, 1, 1]} : vector<20x16x128xf32> to vector<16x16x128xf32>
    %101 = vector.extract_strided_slice %86 {offsets = [1, 0], sizes = [1, 128], strides = [1, 1]} : vector<3x128xf32> to vector<1x128xf32>
    %102 = vector.shape_cast %101 : vector<1x128xf32> to vector<128xf32>
    %103 = vector.shape_cast %102 : vector<128xf32> to vector<1x1x128xf32>
    %104 = vector.broadcast %103 : vector<1x1x128xf32> to vector<16x16x128xf32>
    %105 = arith.mulf %100, %104 : vector<16x16x128xf32>
    %106 = arith.addf %99, %105 : vector<16x16x128xf32>
    %107 = vector.extract_strided_slice %90 {offsets = [4, 0, 0], sizes = [16, 16, 128], strides = [1, 1, 1]} : vector<20x16x128xf32> to vector<16x16x128xf32>
    %108 = vector.extract_strided_slice %86 {offsets = [2, 0], sizes = [1, 128], strides = [1, 1]} : vector<3x128xf32> to vector<1x128xf32>
    %109 = vector.shape_cast %108 : vector<1x128xf32> to vector<128xf32>
    %110 = vector.shape_cast %109 : vector<128xf32> to vector<1x1x128xf32>
    %111 = vector.broadcast %110 : vector<1x1x128xf32> to vector<16x16x128xf32>
    %112 = arith.mulf %107, %111 : vector<16x16x128xf32>
    %113 = arith.addf %106, %112 : vector<16x16x128xf32>
    %114 = vector.shape_cast %113 : vector<16x16x128xf32> to vector<256x128xf32>
    %c0_22 = arith.constant 0 : index
    %c0_23 = arith.constant 0 : index
    %115 = vector.load %arg10[%c0_22, %c0_23] : memref<128x128xf32, #tpu.memory_space<vmem>>, vector<128x128xf32>
    %cst_24 = arith.constant dense<0.000000e+00> : vector<256x128xf32>
    %116 = tpu.matmul %114, %115, %cst_24 {dimension_numbers = #tpu.dot_dimension_numbers<[1], [0], [0], [1], [0, 0, 1, 1], [], []>} : vector<256x128xf32>, vector<128x128xf32>, vector<256x128xf32> -> vector<256x128xf32>
    %c0_25 = arith.constant 0 : index
    %c0_26 = arith.constant 0 : index
    %117 = vector.load %arg11[%c0_25, %c0_26] : memref<1x128xf32, #tpu.memory_space<vmem>>, vector<1x128xf32>
    %118 = vector.broadcast %117 : vector<1x128xf32> to vector<256x128xf32>
    %119 = arith.addf %116, %118 : vector<256x128xf32>
    %120 = vector.shape_cast %119 : vector<256x128xf32> to vector<16x16x128xf32>
    %121 = arith.mulf %120, %1 : vector<16x16x128xf32>
    %c0_27 = arith.constant 0 : index
    %c0_28 = arith.constant 0 : index
    %c0_29 = arith.constant 0 : index
    %c0_30 = arith.constant 0 : index
    %122 = vector.load %arg12[%c0_27, %c0_28, %c0_29, %c0_30] : memref<1x16x16x128xf32, #tpu.memory_space<vmem>>, vector<1x16x16x128xf32>
    %123 = vector.shape_cast %122 : vector<1x16x16x128xf32> to vector<16x16x128xf32>
    %124 = vector.shape_cast %121 : vector<16x16x128xf32> to vector<1x16x16x128xf32>
    tpu.vector_store %arg12[%c0_27, %c0_28, %c0_29, %c0_30], %124 {strides = array<i32>} : memref<1x16x16x128xf32, #tpu.memory_space<vmem>>, vector<1x16x16x128xf32>,
    return
  }
  func.func @transform_0(%arg0: i32) -> (i32, i32, i32, i32) {
    %c0_i32 = arith.constant 0 : i32
    %c0_i32_0 = arith.constant 0 : i32
    %c0_i32_1 = arith.constant 0 : i32
    %c0_i32_2 = arith.constant 0 : i32
    return %arg0, %c0_i32, %c0_i32_0, %c0_i32_1 : i32, i32, i32, i32
  }
  func.func @transform_1(%arg0: i32) -> (i32, i32) {
    %c0_i32 = arith.constant 0 : i32
    %c0_i32_0 = arith.constant 0 : i32
    %c0_i32_1 = arith.constant 0 : i32
    return %c0_i32, %c0_i32_0 : i32, i32
  }
  func.func @transform_2(%arg0: i32) -> (i32, i32) {
    %c0_i32 = arith.constant 0 : i32
    %c0_i32_0 = arith.constant 0 : i32
    %c0_i32_1 = arith.constant 0 : i32
    return %c0_i32, %c0_i32_0 : i32, i32
  }
  func.func @transform_3(%arg0: i32) -> (i32, i32) {
    %c0_i32 = arith.constant 0 : i32
    %c0_i32_0 = arith.constant 0 : i32
    %c0_i32_1 = arith.constant 0 : i32
    return %c0_i32, %c0_i32_0 : i32, i32
  }
  func.func @transform_4(%arg0: i32) -> (i32, i32) {
    %c0_i32 = arith.constant 0 : i32
    %c0_i32_0 = arith.constant 0 : i32
    %c0_i32_1 = arith.constant 0 : i32
    return %c0_i32, %c0_i32_0 : i32, i32
  }
  func.func @transform_5(%arg0: i32) -> (i32, i32) {
    %c0_i32 = arith.constant 0 : i32
    %c0_i32_0 = arith.constant 0 : i32
    %c0_i32_1 = arith.constant 0 : i32
    return %c0_i32, %c0_i32_0 : i32, i32
  }
  func.func @transform_6(%arg0: i32) -> (i32, i32) {
    %c0_i32 = arith.constant 0 : i32
    %c0_i32_0 = arith.constant 0 : i32
    %c0_i32_1 = arith.constant 0 : i32
    return %c0_i32, %c0_i32_0 : i32, i32
  }
  func.func @transform_7(%arg0: i32) -> (i32, i32) {
    %c0_i32 = arith.constant 0 : i32
    %c0_i32_0 = arith.constant 0 : i32
    %c0_i32_1 = arith.constant 0 : i32
    return %c0_i32, %c0_i32_0 : i32, i32
  }
  func.func @transform_8(%arg0: i32) -> (i32, i32) {
    %c0_i32 = arith.constant 0 : i32
    %c0_i32_0 = arith.constant 0 : i32
    %c0_i32_1 = arith.constant 0 : i32
    return %c0_i32, %c0_i32_0 : i32, i32
  }
  func.func @transform_9(%arg0: i32) -> (i32, i32) {
    %c0_i32 = arith.constant 0 : i32
    %c0_i32_0 = arith.constant 0 : i32
    %c0_i32_1 = arith.constant 0 : i32
    return %c0_i32, %c0_i32_0 : i32, i32
  }
  func.func @transform_10(%arg0: i32) -> (i32, i32) {
    %c0_i32 = arith.constant 0 : i32
    %c0_i32_0 = arith.constant 0 : i32
    %c0_i32_1 = arith.constant 0 : i32
    return %c0_i32, %c0_i32_0 : i32, i32
  }
  func.func @transform_11(%arg0: i32) -> (i32, i32, i32, i32) {
    %c0_i32 = arith.constant 0 : i32
    %c0_i32_0 = arith.constant 0 : i32
    %c0_i32_1 = arith.constant 0 : i32
    %c0_i32_2 = arith.constant 0 : i32
    return %arg0, %c0_i32, %c0_i32_0, %c0_i32_1 : i32, i32, i32, i32
  }
}

</mosaic_0001>

<llo_original>
// kernel: tpu_custom_call.1
$region0: #{tpu_custom_call.1}
  #allocation0 [shape = 'u32[]', space=smem, size = 0x4, offset = 0x4, fixed_abs, tag = 'smem constant byte address 0x4 - core index']
  #allocation1 [shape = 'u32[144,128]{1,0:T(1,128)}', space=vmem, size = 0x12000, scoped, tag = 'internal scratch']
  %s0 = inlined_call_operand.hbm [shape: f32[2,16,16,128], index: 0, kind: input, shape index: {}]
  %s1 = inlined_call_operand.hbm [shape: f32[3,128], index: 1, kind: input, shape index: {}]
  %s2 = inlined_call_operand.hbm [shape: f32[1,128], index: 2, kind: input, shape index: {}]
  %s3 = inlined_call_operand.vmem [shape: f32[3,128], index: 3, kind: input, shape index: {}]
  %s4 = inlined_call_operand.hbm [shape: f32[1,128], index: 4, kind: input, shape index: {}]
  %s5 = inlined_call_operand.vmem [shape: f32[3,128], index: 5, kind: input, shape index: {}]
  %s6 = inlined_call_operand.hbm [shape: f32[1,128], index: 6, kind: input, shape index: {}]
  %s7 = inlined_call_operand.vmem [shape: f32[3,128], index: 7, kind: input, shape index: {}]
  %s8 = inlined_call_operand.vmem [shape: f32[1,128], index: 8, kind: input, shape index: {}]
  %s9 = inlined_call_operand.hbm [shape: f32[128,128], index: 9, kind: input, shape index: {}]
  %s10 = inlined_call_operand.vmem [shape: f32[1,128], index: 10, kind: input, shape index: {}]
  %s11 = inlined_call_operand.hbm [shape: f32[2,16,16,128], index: 11, kind: output, shape index: {}]
  %s12 = sld [smem:[#allocation0]]
  $region101: #{tpu_custom_call.1} parent=0
    _
  %s14 = ssub.s32 1, %s12
  %s15 = scalar_select 0, %s14, %s12
  $region1: #{tpu_custom_call.1} parent=0
    #allocation2 [shape = 'u8[262144]{0}', space=vmem, size = 0x40000, scoped, tag = 'input window, operand 0']
    #allocation3 [shape = 's32[2]{0}', space=sflag, size = 0x8, scoped, tag = 'scoped memory for tpu_custom_call.1']
    #allocation4 [shape = 's32[2]{0}', space=sflag, size = 0x8, scoped, tag = 'scoped memory for tpu_custom_call.1']
    #allocation5 [shape = 'u8[2048]{0}', space=vmem, size = 0x800, scoped, tag = 'input window, operand 1, single buffered']
    #allocation6 [shape = 's32[1]{0}', space=sflag, size = 0x4, scoped, tag = 'scoped memory for tpu_custom_call.1']
    #allocation7 [shape = 'u8[512]{0}', space=vmem, size = 0x400, scoped, tag = 'input window, operand 2, single buffered']
    #allocation8 [shape = 'u8[512]{0}', space=vmem, size = 0x400, scoped, tag = 'input window, operand 4, single buffered']
    #allocation9 [shape = 's32[1]{0}', space=sflag, size = 0x4, scoped, tag = 'scoped memory for tpu_custom_call.1']
    #allocation10 [shape = 'u8[512]{0}', space=vmem, size = 0x400, scoped, tag = 'input window, operand 6, single buffered']
    #allocation11 [shape = 'u8[65536]{0}', space=vmem, size = 0x10000, scoped, tag = 'input window, operand 9, single buffered']
    #allocation12 [shape = 's32[1]{0}', space=sflag, size = 0x4, scoped, tag = 'scoped memory for tpu_custom_call.1']
    #allocation13 [shape = 'u8[262144]{0}', space=vmem, size = 0x40000, scoped, tag = 'output window, operand 0']
    %16 = vsyncpa [#allocation3], 0
    %s17 = scalar_lea.sflag [#allocation3], 1
    %18 = vsyncpa %s17, 0
    %19 = vsyncpa [#allocation6], 0
    %20 = vsyncpa [#allocation9], 0
    %21 = vsyncpa [#allocation12], 0
    %22 = vsyncpa [#allocation4], 0
    %s23 = scalar_lea.sflag [#allocation4], 1
    %24 = vsyncpa %s23, 0
    loop: start=0, step=1, limit=4
    $region2: #{tpu_custom_call.1} parent=1 // loop_pre_header
      _
    $region3: #{tpu_custom_call.1} parent=1 // loop_header
      %s26 = sphi 0, %s30
      %p27 = scmp.ge.s32.totalorder %s26, 4
      %s36 = sphi 0, %s38
      %s39 = sphi 0, %s36
      %s40 = sphi 0, %s39
      %s56 = sphi 0, %s40
      %s60 = sphi 0, %s60
      %s62 = sphi 0, %s60
      %s63 = sphi 0, %s62
      %s77 = sphi 0, %s63
      %s81 = sphi 0, %s81
      %s83 = sphi 0, %s81
      %s84 = sphi 0, %s83
      %s98 = sphi 0, %s84
      %s102 = sphi 0, %s102
      %s104 = sphi 0, %s102
      %s105 = sphi 0, %s104
      %s119 = sphi 0, %s105
      %s123 = sphi 0, %s123
      %s125 = sphi 0, %s123
      %s126 = sphi 0, %s125
      %s140 = sphi 0, %s126
      %s144 = sphi 0, %s144
      %s146 = sphi 0, %s144
      %s147 = sphi 0, %s146
      %s161 = sphi 0, %s147
      %s165 = sphi 0, %s165
      %s167 = sphi 0, %s165
      %s168 = sphi 0, %s167
      %s182 = sphi 0, %s168
      %s186 = sphi 0, %s186
      %s188 = sphi 0, %s186
      %s189 = sphi 0, %s188
      %s203 = sphi 0, %s189
      %s207 = sphi 0, %s207
      %s209 = sphi 0, %s207
      %s210 = sphi 0, %s209
      %s224 = sphi 0, %s210
      %s228 = sphi 0, %s228
      %s230 = sphi 0, %s228
      %s231 = sphi 0, %s230
      %s245 = sphi 0, %s231
      %s249 = sphi 0, %s249
      %s251 = sphi 0, %s249
      %s252 = sphi 0, %s251
      %s266 = sphi 0, %s252
      %s272 = sphi 0, %s274
      %s275 = sphi 0, %s272
      %s276 = sphi 0, %s275
      %s292 = sphi 0, %s276
    $region4: #{tpu_custom_call.1} parent=1 // loop_header_branch
      %29 = sbr.rel (%p27) target = $region8
    $region5: #{tpu_custom_call.1} parent=1 // loop_body
      %s31 = ssub.s32 %s26, 1
      %s32 = ssub.s32 %s26, 2
      %s33 = sadd.s32 %s26, 1
      %s34 = ssub.s32 %s26, %s33
      %p35 = scmp.eq.s32.totalorder %s34, 0
      %s37 = sadd.s32 %s36, 1
      %s38 = scalar_select %p35, %s36, %s37
      %p41 = pneg %p35
      %p42 = scmp.eq.s32.totalorder %s26, 1
      %p43 = por %p41, %p42
      %p44 = scmp.ne.s32.totalorder %s36, %s39
      %p45 = scmp.eq.s32.totalorder %s26, 0
      %p46 = por %p44, %p45
      %p47 = scmp.ne.s32.totalorder %s36, %s39
      %p48 = scmp.eq.s32.totalorder %s31, 1
      %p49 = por %p47, %p48
      %p50 = scmp.ne.s32.totalorder %s39, %s40
      %p51 = scmp.eq.s32.totalorder %s31, 0
      %p52 = por %p50, %p51
      %p53 = scmp.ne.s32.totalorder %s39, %s40
      %p54 = scmp.eq.s32.totalorder %s32, 1
      %p55 = por %p53, %p54
      %p57 = scmp.ne.s32.totalorder %s40, %s56
      %p58 = scmp.eq.s32.totalorder %s32, 0
      %p59 = por %p57, %p58
      %s61 = sadd.s32 %s60, 1
      %p64 = scmp.eq.s32.totalorder %s26, 1
      %p65 = scmp.ne.s32.totalorder %s60, %s62
      %p66 = scmp.eq.s32.totalorder %s26, 0
      %p67 = por %p65, %p66
      %p68 = scmp.ne.s32.totalorder %s60, %s62
      %p69 = scmp.eq.s32.totalorder %s31, 1
      %p70 = por %p68, %p69
      %p71 = scmp.ne.s32.totalorder %s62, %s63
      %p72 = scmp.eq.s32.totalorder %s31, 0
      %p73 = por %p71, %p72
      %p74 = scmp.ne.s32.totalorder %s62, %s63
      %p75 = scmp.eq.s32.totalorder %s32, 1
      %p76 = por %p74, %p75
      %p78 = scmp.ne.s32.totalorder %s63, %s77
      %p79 = scmp.eq.s32.totalorder %s32, 0
      %p80 = por %p78, %p79
      %s82 = sadd.s32 %s81, 1
      %p85 = scmp.eq.s32.totalorder %s26, 1
      %p86 = scmp.ne.s32.totalorder %s81, %s83
      %p87 = scmp.eq.s32.totalorder %s26, 0
      %p88 = por %p86, %p87
      %p89 = scmp.ne.s32.totalorder %s81, %s83
      %p90 = scmp.eq.s32.totalorder %s31, 1
      %p91 = por %p89, %p90
      %p92 = scmp.ne.s32.totalorder %s83, %s84
      %p93 = scmp.eq.s32.totalorder %s31, 0
      %p94 = por %p92, %p93
      %p95 = scmp.ne.s32.totalorder %s83, %s84
      %p96 = scmp.eq.s32.totalorder %s32, 1
      %p97 = por %p95, %p96
      %p99 = scmp.ne.s32.totalorder %s84, %s98
      %p100 = scmp.eq.s32.totalorder %s32, 0
      %p101 = por %p99, %p100
      %s103 = sadd.s32 %s102, 1
      %p106 = scmp.eq.s32.totalorder %s26, 1
      %p107 = scmp.ne.s32.totalorder %s102, %s104
      %p108 = scmp.eq.s32.totalorder %s26, 0
      %p109 = por %p107, %p108
      %p110 = scmp.ne.s32.totalorder %s102, %s104
      %p111 = scmp.eq.s32.totalorder %s31, 1
      %p112 = por %p110, %p111
      %p113 = scmp.ne.s32.totalorder %s104, %s105
      %p114 = scmp.eq.s32.totalorder %s31, 0
      %p115 = por %p113, %p114
      %p116 = scmp.ne.s32.totalorder %s104, %s105
      %p117 = scmp.eq.s32.totalorder %s32, 1
      %p118 = por %p116, %p117
      %p120 = scmp.ne.s32.totalorder %s105, %s119
      %p121 = scmp.eq.s32.totalorder %s32, 0
      %p122 = por %p120, %p121
      %s124 = sadd.s32 %s123, 1
      %p127 = scmp.eq.s32.totalorder %s26, 1
      %p128 = scmp.ne.s32.totalorder %s123, %s125
      %p129 = scmp.eq.s32.totalorder %s26, 0
      %p130 = por %p128, %p129
      %p131 = scmp.ne.s32.totalorder %s123, %s125
      %p132 = scmp.eq.s32.totalorder %s31, 1
      %p133 = por %p131, %p132
      %p134 = scmp.ne.s32.totalorder %s125, %s126
      %p135 = scmp.eq.s32.totalorder %s31, 0
      %p136 = por %p134, %p135
      %p137 = scmp.ne.s32.totalorder %s125, %s126
      %p138 = scmp.eq.s32.totalorder %s32, 1
      %p139 = por %p137, %p138
      %p141 = scmp.ne.s32.totalorder %s126, %s140
      %p142 = scmp.eq.s32.totalorder %s32, 0
      %p143 = por %p141, %p142
      %s145 = sadd.s32 %s144, 1
      %p148 = scmp.eq.s32.totalorder %s26, 1
      %p149 = scmp.ne.s32.totalorder %s144, %s146
      %p150 = scmp.eq.s32.totalorder %s26, 0
      %p151 = por %p149, %p150
      %p152 = scmp.ne.s32.totalorder %s144, %s146
      %p153 = scmp.eq.s32.totalorder %s31, 1
      %p154 = por %p152, %p153
      %p155 = scmp.ne.s32.totalorder %s146, %s147
      %p156 = scmp.eq.s32.totalorder %s31, 0
      %p157 = por %p155, %p156
      %p158 = scmp.ne.s32.totalorder %s146, %s147
      %p159 = scmp.eq.s32.totalorder %s32, 1
      %p160 = por %p158, %p159
      %p162 = scmp.ne.s32.totalorder %s147, %s161
      %p163 = scmp.eq.s32.totalorder %s32, 0
      %p164 = por %p162, %p163
      %s166 = sadd.s32 %s165, 1
      %p169 = scmp.eq.s32.totalorder %s26, 1
      %p170 = scmp.ne.s32.totalorder %s165, %s167
      %p171 = scmp.eq.s32.totalorder %s26, 0
      %p172 = por %p170, %p171
      %p173 = scmp.ne.s32.totalorder %s165, %s167
      %p174 = scmp.eq.s32.totalorder %s31, 1
      %p175 = por %p173, %p174
      %p176 = scmp.ne.s32.totalorder %s167, %s168
      %p177 = scmp.eq.s32.totalorder %s31, 0
      %p178 = por %p176, %p177
      %p179 = scmp.ne.s32.totalorder %s167, %s168
      %p180 = scmp.eq.s32.totalorder %s32, 1
      %p181 = por %p179, %p180
      %p183 = scmp.ne.s32.totalorder %s168, %s182
      %p184 = scmp.eq.s32.totalorder %s32, 0
      %p185 = por %p183, %p184
      %s187 = sadd.s32 %s186, 1
      %p190 = scmp.eq.s32.totalorder %s26, 1
      %p191 = scmp.ne.s32.totalorder %s186, %s188
      %p192 = scmp.eq.s32.totalorder %s26, 0
      %p193 = por %p191, %p192
      %p194 = scmp.ne.s32.totalorder %s186, %s188
      %p195 = scmp.eq.s32.totalorder %s31, 1
      %p196 = por %p194, %p195
      %p197 = scmp.ne.s32.totalorder %s188, %s189
      %p198 = scmp.eq.s32.totalorder %s31, 0
      %p199 = por %p197, %p198
      %p200 = scmp.ne.s32.totalorder %s188, %s189
      %p201 = scmp.eq.s32.totalorder %s32, 1
      %p202 = por %p200, %p201
      %p204 = scmp.ne.s32.totalorder %s189, %s203
      %p205 = scmp.eq.s32.totalorder %s32, 0
      %p206 = por %p204, %p205
      %s208 = sadd.s32 %s207, 1
      %p211 = scmp.eq.s32.totalorder %s26, 1
      %p212 = scmp.ne.s32.totalorder %s207, %s209
      %p213 = scmp.eq.s32.totalorder %s26, 0
      %p214 = por %p212, %p213
      %p215 = scmp.ne.s32.totalorder %s207, %s209
      %p216 = scmp.eq.s32.totalorder %s31, 1
      %p217 = por %p215, %p216
      %p218 = scmp.ne.s32.totalorder %s209, %s210
      %p219 = scmp.eq.s32.totalorder %s31, 0
      %p220 = por %p218, %p219
      %p221 = scmp.ne.s32.totalorder %s209, %s210
      %p222 = scmp.eq.s32.totalorder %s32, 1
      %p223 = por %p221, %p222
      %p225 = scmp.ne.s32.totalorder %s210, %s224
      %p226 = scmp.eq.s32.totalorder %s32, 0
      %p227 = por %p225, %p226
      %s229 = sadd.s32 %s228, 1
      %p232 = scmp.eq.s32.totalorder %s26, 1
      %p233 = scmp.ne.s32.totalorder %s228, %s230
      %p234 = scmp.eq.s32.totalorder %s26, 0
      %p235 = por %p233, %p234
      %p236 = scmp.ne.s32.totalorder %s228, %s230
      %p237 = scmp.eq.s32.totalorder %s31, 1
      %p238 = por %p236, %p237
      %p239 = scmp.ne.s32.totalorder %s230, %s231
      %p240 = scmp.eq.s32.totalorder %s31, 0
      %p241 = por %p239, %p240
      %p242 = scmp.ne.s32.totalorder %s230, %s231
      %p243 = scmp.eq.s32.totalorder %s32, 1
      %p244 = por %p242, %p243
      %p246 = scmp.ne.s32.totalorder %s231, %s245
      %p247 = scmp.eq.s32.totalorder %s32, 0
      %p248 = por %p246, %p247
      %s250 = sadd.s32 %s249, 1
      %p253 = scmp.eq.s32.totalorder %s26, 1
      %p254 = scmp.ne.s32.totalorder %s249, %s251
      %p255 = scmp.eq.s32.totalorder %s26, 0
      %p256 = por %p254, %p255
      %p257 = scmp.ne.s32.totalorder %s249, %s251
      %p258 = scmp.eq.s32.totalorder %s31, 1
      %p259 = por %p257, %p258
      %p260 = scmp.ne.s32.totalorder %s251, %s252
      %p261 = scmp.eq.s32.totalorder %s31, 0
      %p262 = por %p260, %p261
      %p263 = scmp.ne.s32.totalorder %s251, %s252
      %p264 = scmp.eq.s32.totalorder %s32, 1
      %p265 = por %p263, %p264
      %p267 = scmp.ne.s32.totalorder %s252, %s266
      %p268 = scmp.eq.s32.totalorder %s32, 0
      %p269 = por %p267, %p268
      %s270 = ssub.s32 %s26, %s33
      %p271 = scmp.eq.s32.totalorder %s270, 0
      %s273 = sadd.s32 %s272, 1
      %s274 = scalar_select %p271, %s272, %s273
      %p277 = pneg %p271
      %p278 = scmp.eq.s32.totalorder %s26, 1
      %p279 = por %p277, %p278
      %p280 = scmp.ne.s32.totalorder %s272, %s275
      %p281 = scmp.eq.s32.totalorder %s26, 0
      %p282 = por %p280, %p281
      %p283 = scmp.ne.s32.totalorder %s272, %s275
      %p284 = scmp.eq.s32.totalorder %s31, 1
      %p285 = por %p283, %p284
      %p286 = scmp.ne.s32.totalorder %s275, %s276
      %p287 = scmp.eq.s32.totalorder %s31, 0
      %p288 = por %p286, %p287
      %p289 = scmp.ne.s32.totalorder %s275, %s276
      %p290 = scmp.eq.s32.totalorder %s32, 1
      %p291 = por %p289, %p290
      %p293 = scmp.ne.s32.totalorder %s276, %s292
      %p294 = scmp.eq.s32.totalorder %s32, 0
      %p295 = por %p293, %p294
      %p296 = scmp.le.s32.totalorder 1, %s26
      %p297 = scmp.lt.s32.totalorder %s26, 3
      %p298 = pnand %p296, %p297
      %p299 = pneg %p298
      // Predicated region
      $region9: #{tpu_custom_call.1} parent=5 // pred_check
        _
      $region10: #{tpu_custom_call.1} parent=5 // pred_check_branch
        %301 = sbr.rel (%p298) target = $region12
      $region11: #{tpu_custom_call.1} parent=5 // pred_region
        %s302 = ssub.s32 %s26, 1
        // Predicated region
        $region13: #{tpu_custom_call.1} parent=11 // pred_check
          %p303 = pneg %p73
        $region14: #{tpu_custom_call.1} parent=11 // pred_check_branch
          %305 = sbr.rel (%p303) target = $region16
        $region15: #{tpu_custom_call.1} parent=11 // pred_region
          %s307 = ssub.s32 64, 64
          %308 = vsyncadd [#allocation6], %s307
          %s310 = sshll.u32 [#allocation5], 4
          %s311 = int_to_ptr.vmem [resolvable:$true] %s310
          %313 = dma.hbm_to_vmem [thread:$0]  %s1, 64, %s311, [#allocation6]
        $region16: #{tpu_custom_call.1} parent=11 // pred_fallthru
          _
        // Predicated region
        $region17: #{tpu_custom_call.1} parent=11 // pred_check
          %p314 = pneg %p94
        $region18: #{tpu_custom_call.1} parent=11 // pred_check_branch
          %316 = sbr.rel (%p314) target = $region20
        $region19: #{tpu_custom_call.1} parent=11 // pred_region
          %s318 = ssub.s32 16, 16
          %319 = vsyncadd [#allocation6], %s318
          %s321 = sshll.u32 [#allocation7], 4
          %s322 = int_to_ptr.vmem [resolvable:$true] %s321
          %324 = dma.hbm_to_vmem [thread:$0]  %s2, 16, %s322, [#allocation6]
        $region20: #{tpu_custom_call.1} parent=11 // pred_fallthru
          _
        // Predicated region
        $region21: #{tpu_custom_call.1} parent=11 // pred_check
          %p325 = pneg %p115
        $region22: #{tpu_custom_call.1} parent=11 // pred_check_branch
          %327 = sbr.rel (%p325) target = $region24
        $region23: #{tpu_custom_call.1} parent=11 // pred_region
          _
        $region24: #{tpu_custom_call.1} parent=11 // pred_fallthru
          _
        // Predicated region
        $region25: #{tpu_custom_call.1} parent=11 // pred_check
          %p328 = pneg %p136
        $region26: #{tpu_custom_call.1} parent=11 // pred_check_branch
          %330 = sbr.rel (%p328) target = $region28
        $region27: #{tpu_custom_call.1} parent=11 // pred_region
          %s332 = ssub.s32 16, 16
          %333 = vsyncadd [#allocation9], %s332
          %s335 = sshll.u32 [#allocation8], 4
          %s336 = int_to_ptr.vmem [resolvable:$true] %s335
          %338 = dma.hbm_to_vmem [thread:$0]  %s4, 16, %s336, [#allocation9]
        $region28: #{tpu_custom_call.1} parent=11 // pred_fallthru
          _
        // Predicated region
        $region29: #{tpu_custom_call.1} parent=11 // pred_check
          %p339 = pneg %p157
        $region30: #{tpu_custom_call.1} parent=11 // pred_check_branch
          %341 = sbr.rel (%p339) target = $region32
        $region31: #{tpu_custom_call.1} parent=11 // pred_region
          _
        $region32: #{tpu_custom_call.1} parent=11 // pred_fallthru
          _
        // Predicated region
        $region33: #{tpu_custom_call.1} parent=11 // pred_check
          %p342 = pneg %p178
        $region34: #{tpu_custom_call.1} parent=11 // pred_check_branch
          %344 = sbr.rel (%p342) target = $region36
        $region35: #{tpu_custom_call.1} parent=11 // pred_region
          %s346 = ssub.s32 16, 16
          %347 = vsyncadd [#allocation9], %s346
          %s349 = sshll.u32 [#allocation10], 4
          %s350 = int_to_ptr.vmem [resolvable:$true] %s349
          %352 = dma.hbm_to_vmem [thread:$0]  %s6, 16, %s350, [#allocation9]
        $region36: #{tpu_custom_call.1} parent=11 // pred_fallthru
          _
        // Predicated region
        $region37: #{tpu_custom_call.1} parent=11 // pred_check
          %p353 = pneg %p199
        $region38: #{tpu_custom_call.1} parent=11 // pred_check_branch
          %355 = sbr.rel (%p353) target = $region40
        $region39: #{tpu_custom_call.1} parent=11 // pred_region
          _
        $region40: #{tpu_custom_call.1} parent=11 // pred_fallthru
          _
        // Predicated region
        $region41: #{tpu_custom_call.1} parent=11 // pred_check
          %p356 = pneg %p220
        $region42: #{tpu_custom_call.1} parent=11 // pred_check_branch
          %358 = sbr.rel (%p356) target = $region44
        $region43: #{tpu_custom_call.1} parent=11 // pred_region
          _
        $region44: #{tpu_custom_call.1} parent=11 // pred_fallthru
          _
        // Predicated region
        $region45: #{tpu_custom_call.1} parent=11 // pred_check
          %p359 = pneg %p241
        $region46: #{tpu_custom_call.1} parent=11 // pred_check_branch
          %361 = sbr.rel (%p359) target = $region48
        $region47: #{tpu_custom_call.1} parent=11 // pred_region
          %s363 = ssub.s32 2048, 2048
          %364 = vsyncadd [#allocation12], %s363
          %s365 = sshll.u32 [#allocation11], 4
          %s366 = int_to_ptr.vmem [resolvable:$true] %s365
          %371 = dma.hbm_to_vmem [thread:$0]  %s9, 2048, %s366, [#allocation12], 128, 128, 8
        $region48: #{tpu_custom_call.1} parent=11 // pred_fallthru
          _
        // Predicated region
        $region49: #{tpu_custom_call.1} parent=11 // pred_check
          %p372 = pneg %p262
        $region50: #{tpu_custom_call.1} parent=11 // pred_check_branch
          %374 = sbr.rel (%p372) target = $region52
        $region51: #{tpu_custom_call.1} parent=11 // pred_region
          _
        $region52: #{tpu_custom_call.1} parent=11 // pred_fallthru
          _
      $region12: #{tpu_custom_call.1} parent=5 // pred_fallthru
        _
      %p375 = scmp.lt.s32.totalorder %s26, 2
      // Predicated region
      $region53: #{tpu_custom_call.1} parent=5 // pred_check
        %p376 = pneg %p375
      $region54: #{tpu_custom_call.1} parent=5 // pred_check_branch
        %378 = sbr.rel (%p376) target = $region56
      $region55: #{tpu_custom_call.1} parent=5 // pred_region
        // Predicated region
        $region57: #{tpu_custom_call.1} parent=55 // pred_check
          %p379 = pneg %p46
        $region58: #{tpu_custom_call.1} parent=55 // pred_check_branch
          %381 = sbr.rel (%p379) target = $region60
        $region59: #{tpu_custom_call.1} parent=55 // pred_region
          %s382 = sand.u32 %s36, 1
          %s383 = scalar_lea.sflag [#allocation3], %s382
          %s384 = sand.u32 %s36, 1
          %s385 = smul.addr %s384, 256
          %s386 = scalar_lea.vmem [#allocation2], %s385
          %s388 = ssub.s32 4096, 4096
          %389 = vsyncadd %s383, %s388
          %s390 = smul.addr %s26, 32
          %s391 = smul.addr %s390, 128
          %s392 = scalar_lea.hbm %s0, %s391
          %s393 = sshll.u32 %s386, 4
          %s394 = int_to_ptr.vmem [resolvable:$true] %s393
          %399 = dma.hbm_to_vmem [thread:$0]  %s392, 4096, %s394, %s383, 128, 128, 8
        $region60: #{tpu_custom_call.1} parent=55 // pred_fallthru
          _
      $region56: #{tpu_custom_call.1} parent=5 // pred_fallthru
        _
      %p400 = scmp.le.s32.totalorder 1, %s26
      %p401 = scmp.lt.s32.totalorder %s26, 3
      %p402 = pnand %p400, %p401
      %p403 = pneg %p402
      // Predicated region
      $region61: #{tpu_custom_call.1} parent=5 // pred_check
        _
      $region62: #{tpu_custom_call.1} parent=5 // pred_check_branch
        %405 = sbr.rel (%p402) target = $region64
      $region63: #{tpu_custom_call.1} parent=5 // pred_region
        %s406 = ssub.s32 %s26, 1
        %s407 = sand.u32 %s39, 1
        %s408 = scalar_lea.sflag [#allocation3], %s407
        %s409 = sand.u32 %s39, 1
        %s410 = smul.addr %s409, 256
        %s411 = scalar_lea.vmem [#allocation2], %s410
        // Predicated region
        $region65: #{tpu_custom_call.1} parent=63 // pred_check
          %p412 = pneg %p52
        $region66: #{tpu_custom_call.1} parent=63 // pred_check_branch
          %414 = sbr.rel (%p412) target = $region68
        $region67: #{tpu_custom_call.1} parent=63 // pred_region
          %415 = dma.done %s408, 4096
        $region68: #{tpu_custom_call.1} parent=63 // pred_fallthru
          _
        // Predicated region
        $region69: #{tpu_custom_call.1} parent=63 // pred_check
          %p416 = pneg %p73
        $region70: #{tpu_custom_call.1} parent=63 // pred_check_branch
          %418 = sbr.rel (%p416) target = $region72
        $region71: #{tpu_custom_call.1} parent=63 // pred_region
          %419 = dma.done [#allocation6], 64
        $region72: #{tpu_custom_call.1} parent=63 // pred_fallthru
          _
        // Predicated region
        $region73: #{tpu_custom_call.1} parent=63 // pred_check
          %p420 = pneg %p94
        $region74: #{tpu_custom_call.1} parent=63 // pred_check_branch
          %422 = sbr.rel (%p420) target = $region76
        $region75: #{tpu_custom_call.1} parent=63 // pred_region
          %423 = dma.done [#allocation6], 16
        $region76: #{tpu_custom_call.1} parent=63 // pred_fallthru
          _
        // Predicated region
        $region77: #{tpu_custom_call.1} parent=63 // pred_check
          %p424 = pneg %p136
        $region78: #{tpu_custom_call.1} parent=63 // pred_check_branch
          %426 = sbr.rel (%p424) target = $region80
        $region79: #{tpu_custom_call.1} parent=63 // pred_region
          %427 = dma.done [#allocation9], 16
        $region80: #{tpu_custom_call.1} parent=63 // pred_fallthru
          _
        // Predicated region
        $region81: #{tpu_custom_call.1} parent=63 // pred_check
          %p428 = pneg %p178
        $region82: #{tpu_custom_call.1} parent=63 // pred_check_branch
          %430 = sbr.rel (%p428) target = $region84
        $region83: #{tpu_custom_call.1} parent=63 // pred_region
          %431 = dma.done [#allocation9], 16
        $region84: #{tpu_custom_call.1} parent=63 // pred_fallthru
          _
        // Predicated region
        $region85: #{tpu_custom_call.1} parent=63 // pred_check
          %p432 = pneg %p241
        $region86: #{tpu_custom_call.1} parent=63 // pred_check_branch
          %434 = sbr.rel (%p432) target = $region88
        $region87: #{tpu_custom_call.1} parent=63 // pred_region
          %435 = dma.done [#allocation12], 2048
        $region88: #{tpu_custom_call.1} parent=63 // pred_fallthru
          _
        %s436 = sand.u32 %s39, 1
        %s437 = scalar_lea.sflag [#allocation3], %s436
        %s438 = sand.u32 %s39, 1
        %s439 = smul.addr %s438, 256
        %s440 = scalar_lea.vmem [#allocation2], %s439
        %p441 = pneg %p52
        %p442 = pneg %p49
        %p443 = pneg %p73
        %p444 = pneg %p70
        %p445 = pneg %p94
        %p446 = pneg %p91
        %p447 = pneg %p115
        %p448 = pneg %p112
        %p449 = pneg %p136
        %p450 = pneg %p133
        %p451 = pneg %p157
        %p452 = pneg %p154
        %p453 = pneg %p178
        %p454 = pneg %p175
        %p455 = pneg %p199
        %p456 = pneg %p196
        %p457 = pneg %p220
        %p458 = pneg %p217
        %p459 = pneg %p241
        %p460 = pneg %p238
        %p461 = pneg %p262
        %p462 = pneg %p259
        %p463 = pneg %p288
        %p464 = pneg %p285
        %s465 = sand.u32 %s275, 1
        %s466 = scalar_lea.sflag [#allocation4], %s465
        %s467 = sand.u32 %s275, 1
        %s468 = smul.addr %s467, 256
        %s469 = scalar_lea.vmem [#allocation13], %s468
        %v470 = vld [vmem:[%s411] sm:$0xff]
        %v471 = vld [vmem:[%s411 + $0x8] sm:$0xff]
        %v472 = vld [vmem:[%s411 + $0x10] sm:$0xff]
        %v473 = vld [vmem:[%s411 + $0x18] sm:$0xff]
        %v474 = vld [vmem:[%s411 + $0x20] sm:$0xff]
        %v475 = vld [vmem:[%s411 + $0x28] sm:$0xff]
        %v476 = vld [vmem:[%s411 + $0x30] sm:$0xff]
        %v477 = vld [vmem:[%s411 + $0x38] sm:$0xff]
        %v478 = vld [vmem:[%s411 + $0x40] sm:$0xff]
        %v479 = vld [vmem:[%s411 + $0x48] sm:$0xff]
        %v480 = vld [vmem:[%s411 + $0x50] sm:$0xff]
        %v481 = vld [vmem:[%s411 + $0x58] sm:$0xff]
        %v482 = vld [vmem:[%s411 + $0x60] sm:$0xff]
        %v483 = vld [vmem:[%s411 + $0x68] sm:$0xff]
        %v484 = vld [vmem:[%s411 + $0x70] sm:$0xff]
        %v485 = vld [vmem:[%s411 + $0x78] sm:$0xff]
        %v486 = vld [vmem:[%s411 + $0x80] sm:$0xff]
        %v487 = vld [vmem:[%s411 + $0x88] sm:$0xff]
        %v488 = vld [vmem:[%s411 + $0x90] sm:$0xff]
        %v489 = vld [vmem:[%s411 + $0x98] sm:$0xff]
        %v490 = vld [vmem:[%s411 + $0xa0] sm:$0xff]
        %v491 = vld [vmem:[%s411 + $0xa8] sm:$0xff]
        %v492 = vld [vmem:[%s411 + $0xb0] sm:$0xff]
        %v493 = vld [vmem:[%s411 + $0xb8] sm:$0xff]
        %v494 = vld [vmem:[%s411 + $0xc0] sm:$0xff]
        %v495 = vld [vmem:[%s411 + $0xc8] sm:$0xff]
        %v496 = vld [vmem:[%s411 + $0xd0] sm:$0xff]
        %v497 = vld [vmem:[%s411 + $0xd8] sm:$0xff]
        %v498 = vld [vmem:[%s411 + $0xe0] sm:$0xff]
        %v499 = vld [vmem:[%s411 + $0xe8] sm:$0xff]
        %v500 = vld [vmem:[%s411 + $0xf0] sm:$0xff]
        %v501 = vld [vmem:[%s411 + $0xf8] sm:$0xff]
        %v502 = vld [vmem:[#allocation5] sm:$0x7]
        %v503 = vld [vmem:[#allocation7] sm:$0x1]
        %vm536 = vcmask 1040384
        %v537 = vrot.slane %v470, 7
        %v538 = vrot.slane %v471, 7
        %v539 = vsel %vm536, %v537, %v538
        %v540 = vrot.slane %v472, 7
        %v541 = vrot.slane %v473, 7
        %v542 = vsel %vm536, %v540, %v541
        %v543 = vrot.slane %v474, 7
        %v544 = vrot.slane %v475, 7
        %v545 = vsel %vm536, %v543, %v544
        %v546 = vrot.slane %v476, 7
        %v547 = vrot.slane %v477, 7
        %v548 = vsel %vm536, %v546, %v547
        %v549 = vrot.slane %v478, 7
        %v550 = vrot.slane %v479, 7
        %v551 = vsel %vm536, %v549, %v550
        %v552 = vrot.slane %v480, 7
        %v553 = vrot.slane %v481, 7
        %v554 = vsel %vm536, %v552, %v553
        %v555 = vrot.slane %v482, 7
        %v556 = vrot.slane %v483, 7
        %v557 = vsel %vm536, %v555, %v556
        %v558 = vrot.slane %v484, 7
        %v559 = vrot.slane %v485, 7
        %v560 = vsel %vm536, %v558, %v559
        %v561 = vrot.slane %v486, 7
        %v562 = vrot.slane %v487, 7
        %v563 = vsel %vm536, %v561, %v562
        %v564 = vrot.slane %v488, 7
        %v565 = vrot.slane %v489, 7
        %v566 = vsel %vm536, %v564, %v565
        %v567 = vrot.slane %v490, 7
        %v568 = vrot.slane %v491, 7
        %v569 = vsel %vm536, %v567, %v568
        %v570 = vrot.slane %v492, 7
        %v571 = vrot.slane %v493, 7
        %v572 = vsel %vm536, %v570, %v571
        %v573 = vrot.slane %v494, 7
        %v574 = vrot.slane %v495, 7
        %v575 = vsel %vm536, %v573, %v574
        %v576 = vrot.slane %v496, 7
        %v577 = vrot.slane %v497, 7
        %v578 = vsel %vm536, %v576, %v577
        %v579 = vrot.slane %v498, 7
        %v580 = vrot.slane %v499, 7
        %v581 = vsel %vm536, %v579, %v580
        %v582 = vrot.slane %v500, 7
        %v583 = vrot.slane %v501, 7
        %v584 = vsel %vm536, %v582, %v583
        %v633 = vsel %vm536, 0.0, %v537
        %v634 = vsel %vm536, 0.0, %v540
        %v635 = vsel %vm536, 0.0, %v543
        %v636 = vsel %vm536, 0.0, %v546
        %v637 = vsel %vm536, 0.0, %v549
        %v638 = vsel %vm536, 0.0, %v552
        %v639 = vsel %vm536, 0.0, %v555
        %v640 = vsel %vm536, 0.0, %v558
        %v641 = vsel %vm536, 0.0, %v561
        %v642 = vsel %vm536, 0.0, %v564
        %v643 = vsel %vm536, 0.0, %v567
        %v644 = vsel %vm536, 0.0, %v570
        %v645 = vsel %vm536, 0.0, %v573
        %v646 = vsel %vm536, 0.0, %v576
        %v647 = vsel %vm536, 0.0, %v579
        %v648 = vsel %vm536, 0.0, %v582
        %v649 = vsel %vm536, %v538, 0.0
        %v650 = vsel %vm536, %v541, 0.0
        %v651 = vsel %vm536, %v544, 0.0
        %v652 = vsel %vm536, %v547, 0.0
        %v653 = vsel %vm536, %v550, 0.0
        %v654 = vsel %vm536, %v553, 0.0
        %v655 = vsel %vm536, %v556, 0.0
        %v656 = vsel %vm536, %v559, 0.0
        %v657 = vsel %vm536, %v562, 0.0
        %v658 = vsel %vm536, %v565, 0.0
        %v659 = vsel %vm536, %v568, 0.0
        %v660 = vsel %vm536, %v571, 0.0
        %v661 = vsel %vm536, %v574, 0.0
        %v662 = vsel %vm536, %v577, 0.0
        %v663 = vsel %vm536, %v580, 0.0
        %v664 = vsel %vm536, %v583, 0.0
        %v665 = vlaneseq
        %v666 = vshrl.u32 %v665, 7
        %v667 = vsub.s32 0, %v666
        %v668 = vrot.slane %v502, %v667
        %v669 = vmul.f32 %v633, %v668
        %v670 = vmul.f32 %v539, %v668
        %v671 = vmul.f32 %v634, %v668
        %v672 = vmul.f32 %v542, %v668
        %v673 = vmul.f32 %v635, %v668
        %v674 = vmul.f32 %v545, %v668
        %v675 = vmul.f32 %v636, %v668
        %v676 = vmul.f32 %v548, %v668
        %v677 = vmul.f32 %v637, %v668
        %v678 = vmul.f32 %v551, %v668
        %v679 = vmul.f32 %v638, %v668
        %v680 = vmul.f32 %v554, %v668
        %v681 = vmul.f32 %v639, %v668
        %v682 = vmul.f32 %v557, %v668
        %v683 = vmul.f32 %v640, %v668
        %v684 = vmul.f32 %v560, %v668
        %v685 = vmul.f32 %v641, %v668
        %v686 = vmul.f32 %v563, %v668
        %v687 = vmul.f32 %v642, %v668
        %v688 = vmul.f32 %v566, %v668
        %v689 = vmul.f32 %v643, %v668
        %v690 = vmul.f32 %v569, %v668
        %v691 = vmul.f32 %v644, %v668
        %v692 = vmul.f32 %v572, %v668
        %v693 = vmul.f32 %v645, %v668
        %v694 = vmul.f32 %v575, %v668
        %v695 = vmul.f32 %v646, %v668
        %v696 = vmul.f32 %v578, %v668
        %v697 = vmul.f32 %v647, %v668
        %v698 = vmul.f32 %v581, %v668
        %v699 = vmul.f32 %v648, %v668
        %v700 = vmul.f32 %v584, %v668
        %v702 = vlaneseq
        %v703 = vshrl.u32 %v702, 7
        %v704 = vsub.s32 0, %v703
        %v705 = vrot.slane %v503, %v704
        %v707 = vadd.f32 %v669, %v705
        %v708 = vadd.f32 %v670, %v705
        %v709 = vadd.f32 %v671, %v705
        %v710 = vadd.f32 %v672, %v705
        %v711 = vadd.f32 %v673, %v705
        %v712 = vadd.f32 %v674, %v705
        %v713 = vadd.f32 %v675, %v705
        %v714 = vadd.f32 %v676, %v705
        %v715 = vadd.f32 %v677, %v705
        %v716 = vadd.f32 %v678, %v705
        %v717 = vadd.f32 %v679, %v705
        %v718 = vadd.f32 %v680, %v705
        %v719 = vadd.f32 %v681, %v705
        %v720 = vadd.f32 %v682, %v705
        %v721 = vadd.f32 %v683, %v705
        %v722 = vadd.f32 %v684, %v705
        %v723 = vadd.f32 %v685, %v705
        %v724 = vadd.f32 %v686, %v705
        %v725 = vadd.f32 %v687, %v705
        %v726 = vadd.f32 %v688, %v705
        %v727 = vadd.f32 %v689, %v705
        %v728 = vadd.f32 %v690, %v705
        %v729 = vadd.f32 %v691, %v705
        %v730 = vadd.f32 %v692, %v705
        %v731 = vadd.f32 %v693, %v705
        %v732 = vadd.f32 %v694, %v705
        %v733 = vadd.f32 %v695, %v705
        %v734 = vadd.f32 %v696, %v705
        %v735 = vadd.f32 %v697, %v705
        %v736 = vadd.f32 %v698, %v705
        %v737 = vadd.f32 %v699, %v705
        %v738 = vadd.f32 %v700, %v705
        %v739 = vlaneseq
        %v740 = vshrl.u32 %v739, 7
        %v741 = vsub.s32 1, %v740
        %v742 = vrot.slane %v502, %v741
        %v743 = vmul.f32 %v633, %v742
        %v744 = vmul.f32 %v539, %v742
        %v745 = vmul.f32 %v649, %v742
        %v746 = vmul.f32 %v634, %v742
        %v747 = vmul.f32 %v542, %v742
        %v748 = vmul.f32 %v650, %v742
        %v749 = vmul.f32 %v635, %v742
        %v750 = vmul.f32 %v545, %v742
        %v751 = vmul.f32 %v651, %v742
        %v752 = vmul.f32 %v636, %v742
        %v753 = vmul.f32 %v548, %v742
        %v754 = vmul.f32 %v652, %v742
        %v755 = vmul.f32 %v637, %v742
        %v756 = vmul.f32 %v551, %v742
        %v757 = vmul.f32 %v653, %v742
        %v758 = vmul.f32 %v638, %v742
        %v759 = vmul.f32 %v554, %v742
        %v760 = vmul.f32 %v654, %v742
        %v761 = vmul.f32 %v639, %v742
        %v762 = vmul.f32 %v557, %v742
        %v763 = vmul.f32 %v655, %v742
        %v764 = vmul.f32 %v640, %v742
        %v765 = vmul.f32 %v560, %v742
        %v766 = vmul.f32 %v656, %v742
        %v767 = vmul.f32 %v641, %v742
        %v768 = vmul.f32 %v563, %v742
        %v769 = vmul.f32 %v657, %v742
        %v770 = vmul.f32 %v642, %v742
        %v771 = vmul.f32 %v566, %v742
        %v772 = vmul.f32 %v658, %v742
        %v773 = vmul.f32 %v643, %v742
        %v774 = vmul.f32 %v569, %v742
        %v775 = vmul.f32 %v659, %v742
        %v776 = vmul.f32 %v644, %v742
        %v777 = vmul.f32 %v572, %v742
        %v778 = vmul.f32 %v660, %v742
        %v779 = vmul.f32 %v645, %v742
        %v780 = vmul.f32 %v575, %v742
        %v781 = vmul.f32 %v661, %v742
        %v782 = vmul.f32 %v646, %v742
        %v783 = vmul.f32 %v578, %v742
        %v784 = vmul.f32 %v662, %v742
        %v785 = vmul.f32 %v647, %v742
        %v786 = vmul.f32 %v581, %v742
        %v787 = vmul.f32 %v663, %v742
        %v788 = vmul.f32 %v648, %v742
        %v789 = vmul.f32 %v584, %v742
        %v790 = vmul.f32 %v664, %v742
        %vm839 = vcmask 1046528
        %v840 = vrot.slane %v743, 1
        %v841 = vrot.slane %v744, 1
        %v842 = vsel %vm839, %v840, %v841
        %v843 = vrot.slane %v745, 1
        %v844 = vsel %vm839, %v841, %v843
        %v845 = vrot.slane %v746, 1
        %v846 = vrot.slane %v747, 1
        %v847 = vsel %vm839, %v845, %v846
        %v848 = vrot.slane %v748, 1
        %v849 = vsel %vm839, %v846, %v848
        %v850 = vrot.slane %v749, 1
        %v851 = vrot.slane %v750, 1
        %v852 = vsel %vm839, %v850, %v851
        %v853 = vrot.slane %v751, 1
        %v854 = vsel %vm839, %v851, %v853
        %v855 = vrot.slane %v752, 1
        %v856 = vrot.slane %v753, 1
        %v857 = vsel %vm839, %v855, %v856
        %v858 = vrot.slane %v754, 1
        %v859 = vsel %vm839, %v856, %v858
        %v860 = vrot.slane %v755, 1
        %v861 = vrot.slane %v756, 1
        %v862 = vsel %vm839, %v860, %v861
        %v863 = vrot.slane %v757, 1
        %v864 = vsel %vm839, %v861, %v863
        %v865 = vrot.slane %v758, 1
        %v866 = vrot.slane %v759, 1
        %v867 = vsel %vm839, %v865, %v866
        %v868 = vrot.slane %v760, 1
        %v869 = vsel %vm839, %v866, %v868
        %v870 = vrot.slane %v761, 1
        %v871 = vrot.slane %v762, 1
        %v872 = vsel %vm839, %v870, %v871
        %v873 = vrot.slane %v763, 1
        %v874 = vsel %vm839, %v871, %v873
        %v875 = vrot.slane %v764, 1
        %v876 = vrot.slane %v765, 1
        %v877 = vsel %vm839, %v875, %v876
        %v878 = vrot.slane %v766, 1
        %v879 = vsel %vm839, %v876, %v878
        %v880 = vrot.slane %v767, 1
        %v881 = vrot.slane %v768, 1
        %v882 = vsel %vm839, %v880, %v881
        %v883 = vrot.slane %v769, 1
        %v884 = vsel %vm839, %v881, %v883
        %v885 = vrot.slane %v770, 1
        %v886 = vrot.slane %v771, 1
        %v887 = vsel %vm839, %v885, %v886
        %v888 = vrot.slane %v772, 1
        %v889 = vsel %vm839, %v886, %v888
        %v890 = vrot.slane %v773, 1
        %v891 = vrot.slane %v774, 1
        %v892 = vsel %vm839, %v890, %v891
        %v893 = vrot.slane %v775, 1
        %v894 = vsel %vm839, %v891, %v893
        %v895 = vrot.slane %v776, 1
        %v896 = vrot.slane %v777, 1
        %v897 = vsel %vm839, %v895, %v896
        %v898 = vrot.slane %v778, 1
        %v899 = vsel %vm839, %v896, %v898
        %v900 = vrot.slane %v779, 1
        %v901 = vrot.slane %v780, 1
        %v902 = vsel %vm839, %v900, %v901
        %v903 = vrot.slane %v781, 1
        %v904 = vsel %vm839, %v901, %v903
        %v905 = vrot.slane %v782, 1
        %v906 = vrot.slane %v783, 1
        %v907 = vsel %vm839, %v905, %v906
        %v908 = vrot.slane %v784, 1
        %v909 = vsel %vm839, %v906, %v908
        %v910 = vrot.slane %v785, 1
        %v911 = vrot.slane %v786, 1
        %v912 = vsel %vm839, %v910, %v911
        %v913 = vrot.slane %v787, 1
        %v914 = vsel %vm839, %v911, %v913
        %v915 = vrot.slane %v788, 1
        %v916 = vrot.slane %v789, 1
        %v917 = vsel %vm839, %v915, %v916
        %v918 = vrot.slane %v790, 1
        %v919 = vsel %vm839, %v916, %v918
        %v952 = vadd.f32 %v707, %v842
        %v953 = vadd.f32 %v708, %v844
        %v954 = vadd.f32 %v709, %v847
        %v955 = vadd.f32 %v710, %v849
        %v956 = vadd.f32 %v711, %v852
        %v957 = vadd.f32 %v712, %v854
        %v958 = vadd.f32 %v713, %v857
        %v959 = vadd.f32 %v714, %v859
        %v960 = vadd.f32 %v715, %v862
        %v961 = vadd.f32 %v716, %v864
        %v962 = vadd.f32 %v717, %v867
        %v963 = vadd.f32 %v718, %v869
        %v964 = vadd.f32 %v719, %v872
        %v965 = vadd.f32 %v720, %v874
        %v966 = vadd.f32 %v721, %v877
        %v967 = vadd.f32 %v722, %v879
        %v968 = vadd.f32 %v723, %v882
        %v969 = vadd.f32 %v724, %v884
        %v970 = vadd.f32 %v725, %v887
        %v971 = vadd.f32 %v726, %v889
        %v972 = vadd.f32 %v727, %v892
        %v973 = vadd.f32 %v728, %v894
        %v974 = vadd.f32 %v729, %v897
        %v975 = vadd.f32 %v730, %v899
        %v976 = vadd.f32 %v731, %v902
        %v977 = vadd.f32 %v732, %v904
        %v978 = vadd.f32 %v733, %v907
        %v979 = vadd.f32 %v734, %v909
        %v980 = vadd.f32 %v735, %v912
        %v981 = vadd.f32 %v736, %v914
        %v982 = vadd.f32 %v737, %v917
        %v983 = vadd.f32 %v738, %v919
        %v984 = vlaneseq
        %v985 = vshrl.u32 %v984, 7
        %v986 = vsub.s32 2, %v985
        %v987 = vrot.slane %v502, %v986
        %v988 = vmul.f32 %v633, %v987
        %v989 = vmul.f32 %v539, %v987
        %v990 = vmul.f32 %v649, %v987
        %v991 = vmul.f32 %v634, %v987
        %v992 = vmul.f32 %v542, %v987
        %v993 = vmul.f32 %v650, %v987
        %v994 = vmul.f32 %v635, %v987
        %v995 = vmul.f32 %v545, %v987
        %v996 = vmul.f32 %v651, %v987
        %v997 = vmul.f32 %v636, %v987
        %v998 = vmul.f32 %v548, %v987
        %v999 = vmul.f32 %v652, %v987
        %v1000 = vmul.f32 %v637, %v987
        %v1001 = vmul.f32 %v551, %v987
        %v1002 = vmul.f32 %v653, %v987
        %v1003 = vmul.f32 %v638, %v987
        %v1004 = vmul.f32 %v554, %v987
        %v1005 = vmul.f32 %v654, %v987
        %v1006 = vmul.f32 %v639, %v987
        %v1007 = vmul.f32 %v557, %v987
        %v1008 = vmul.f32 %v655, %v987
        %v1009 = vmul.f32 %v640, %v987
        %v1010 = vmul.f32 %v560, %v987
        %v1011 = vmul.f32 %v656, %v987
        %v1012 = vmul.f32 %v641, %v987
        %v1013 = vmul.f32 %v563, %v987
        %v1014 = vmul.f32 %v657, %v987
        %v1015 = vmul.f32 %v642, %v987
        %v1016 = vmul.f32 %v566, %v987
        %v1017 = vmul.f32 %v658, %v987
        %v1018 = vmul.f32 %v643, %v987
        %v1019 = vmul.f32 %v569, %v987
        %v1020 = vmul.f32 %v659, %v987
        %v1021 = vmul.f32 %v644, %v987
        %v1022 = vmul.f32 %v572, %v987
        %v1023 = vmul.f32 %v660, %v987
        %v1024 = vmul.f32 %v645, %v987
        %v1025 = vmul.f32 %v575, %v987
        %v1026 = vmul.f32 %v661, %v987
        %v1027 = vmul.f32 %v646, %v987
        %v1028 = vmul.f32 %v578, %v987
        %v1029 = vmul.f32 %v662, %v987
        %v1030 = vmul.f32 %v647, %v987
        %v1031 = vmul.f32 %v581, %v987
        %v1032 = vmul.f32 %v663, %v987
        %v1033 = vmul.f32 %v648, %v987
        %v1034 = vmul.f32 %v584, %v987
        %v1035 = vmul.f32 %v664, %v987
        %vm1084 = vcmask 1045504
        %v1085 = vrot.slane %v988, 2
        %v1086 = vrot.slane %v989, 2
        %v1087 = vsel %vm1084, %v1085, %v1086
        %v1088 = vrot.slane %v990, 2
        %v1089 = vsel %vm1084, %v1086, %v1088
        %v1090 = vrot.slane %v991, 2
        %v1091 = vrot.slane %v992, 2
        %v1092 = vsel %vm1084, %v1090, %v1091
        %v1093 = vrot.slane %v993, 2
        %v1094 = vsel %vm1084, %v1091, %v1093
        %v1095 = vrot.slane %v994, 2
        %v1096 = vrot.slane %v995, 2
        %v1097 = vsel %vm1084, %v1095, %v1096
        %v1098 = vrot.slane %v996, 2
        %v1099 = vsel %vm1084, %v1096, %v1098
        %v1100 = vrot.slane %v997, 2
        %v1101 = vrot.slane %v998, 2
        %v1102 = vsel %vm1084, %v1100, %v1101
        %v1103 = vrot.slane %v999, 2
        %v1104 = vsel %vm1084, %v1101, %v1103
        %v1105 = vrot.slane %v1000, 2
        %v1106 = vrot.slane %v1001, 2
        %v1107 = vsel %vm1084, %v1105, %v1106
        %v1108 = vrot.slane %v1002, 2
        %v1109 = vsel %vm1084, %v1106, %v1108
        %v1110 = vrot.slane %v1003, 2
        %v1111 = vrot.slane %v1004, 2
        %v1112 = vsel %vm1084, %v1110, %v1111
        %v1113 = vrot.slane %v1005, 2
        %v1114 = vsel %vm1084, %v1111, %v1113
        %v1115 = vrot.slane %v1006, 2
        %v1116 = vrot.slane %v1007, 2
        %v1117 = vsel %vm1084, %v1115, %v1116
        %v1118 = vrot.slane %v1008, 2
        %v1119 = vsel %vm1084, %v1116, %v1118
        %v1120 = vrot.slane %v1009, 2
        %v1121 = vrot.slane %v1010, 2
        %v1122 = vsel %vm1084, %v1120, %v1121
        %v1123 = vrot.slane %v1011, 2
        %v1124 = vsel %vm1084, %v1121, %v1123
        %v1125 = vrot.slane %v1012, 2
        %v1126 = vrot.slane %v1013, 2
        %v1127 = vsel %vm1084, %v1125, %v1126
        %v1128 = vrot.slane %v1014, 2
        %v1129 = vsel %vm1084, %v1126, %v1128
        %v1130 = vrot.slane %v1015, 2
        %v1131 = vrot.slane %v1016, 2
        %v1132 = vsel %vm1084, %v1130, %v1131
        %v1133 = vrot.slane %v1017, 2
        %v1134 = vsel %vm1084, %v1131, %v1133
        %v1135 = vrot.slane %v1018, 2
        %v1136 = vrot.slane %v1019, 2
        %v1137 = vsel %vm1084, %v1135, %v1136
        %v1138 = vrot.slane %v1020, 2
        %v1139 = vsel %vm1084, %v1136, %v1138
        %v1140 = vrot.slane %v1021, 2
        %v1141 = vrot.slane %v1022, 2
        %v1142 = vsel %vm1084, %v1140, %v1141
        %v1143 = vrot.slane %v1023, 2
        %v1144 = vsel %vm1084, %v1141, %v1143
        %v1145 = vrot.slane %v1024, 2
        %v1146 = vrot.slane %v1025, 2
        %v1147 = vsel %vm1084, %v1145, %v1146
        %v1148 = vrot.slane %v1026, 2
        %v1149 = vsel %vm1084, %v1146, %v1148
        %v1150 = vrot.slane %v1027, 2
        %v1151 = vrot.slane %v1028, 2
        %v1152 = vsel %vm1084, %v1150, %v1151
        %v1153 = vrot.slane %v1029, 2
        %v1154 = vsel %vm1084, %v1151, %v1153
        %v1155 = vrot.slane %v1030, 2
        %v1156 = vrot.slane %v1031, 2
        %v1157 = vsel %vm1084, %v1155, %v1156
        %v1158 = vrot.slane %v1032, 2
        %v1159 = vsel %vm1084, %v1156, %v1158
        %v1160 = vrot.slane %v1033, 2
        %v1161 = vrot.slane %v1034, 2
        %v1162 = vsel %vm1084, %v1160, %v1161
        %v1163 = vrot.slane %v1035, 2
        %v1164 = vsel %vm1084, %v1161, %v1163
        %v1197 = vadd.f32 %v952, %v1087
        %v1198 = vadd.f32 %v953, %v1089
        %v1199 = vadd.f32 %v954, %v1092
        %v1200 = vadd.f32 %v955, %v1094
        %v1201 = vadd.f32 %v956, %v1097
        %v1202 = vadd.f32 %v957, %v1099
        %v1203 = vadd.f32 %v958, %v1102
        %v1204 = vadd.f32 %v959, %v1104
        %v1205 = vadd.f32 %v960, %v1107
        %v1206 = vadd.f32 %v961, %v1109
        %v1207 = vadd.f32 %v962, %v1112
        %v1208 = vadd.f32 %v963, %v1114
        %v1209 = vadd.f32 %v964, %v1117
        %v1210 = vadd.f32 %v965, %v1119
        %v1211 = vadd.f32 %v966, %v1122
        %v1212 = vadd.f32 %v967, %v1124
        %v1213 = vadd.f32 %v968, %v1127
        %v1214 = vadd.f32 %v969, %v1129
        %v1215 = vadd.f32 %v970, %v1132
        %v1216 = vadd.f32 %v971, %v1134
        %v1217 = vadd.f32 %v972, %v1137
        %v1218 = vadd.f32 %v973, %v1139
        %v1219 = vadd.f32 %v974, %v1142
        %v1220 = vadd.f32 %v975, %v1144
        %v1221 = vadd.f32 %v976, %v1147
        %v1222 = vadd.f32 %v977, %v1149
        %v1223 = vadd.f32 %v978, %v1152
        %v1224 = vadd.f32 %v979, %v1154
        %v1225 = vadd.f32 %v980, %v1157
        %v1226 = vadd.f32 %v981, %v1159
        %v1227 = vadd.f32 %v982, %v1162
        %v1228 = vadd.f32 %v983, %v1164
        %v1229 = vld [vmem:[%s3] sm:$0x7]
        %v1230 = vld [vmem:[#allocation8] sm:$0x1]
        %v1231 = vlaneseq
        %v1232 = vshrl.u32 %v1231, 7
        %v1233 = vsub.s32 0, %v1232
        %v1234 = vrot.slane %v1229, %v1233
        %v1235 = vmul.f32 %v1234, 0.0
        %v1236 = vmul.f32 %v1197, %v1234
        %v1237 = vmul.f32 %v1198, %v1234
        %v1238 = vmul.f32 %v1199, %v1234
        %v1239 = vmul.f32 %v1200, %v1234
        %v1240 = vmul.f32 %v1201, %v1234
        %v1241 = vmul.f32 %v1202, %v1234
        %v1242 = vmul.f32 %v1203, %v1234
        %v1243 = vmul.f32 %v1204, %v1234
        %v1244 = vmul.f32 %v1205, %v1234
        %v1245 = vmul.f32 %v1206, %v1234
        %v1246 = vmul.f32 %v1207, %v1234
        %v1247 = vmul.f32 %v1208, %v1234
        %v1248 = vmul.f32 %v1209, %v1234
        %v1249 = vmul.f32 %v1210, %v1234
        %v1250 = vmul.f32 %v1211, %v1234
        %v1251 = vmul.f32 %v1212, %v1234
        %v1252 = vmul.f32 %v1213, %v1234
        %v1253 = vmul.f32 %v1214, %v1234
        %v1254 = vmul.f32 %v1215, %v1234
        %v1255 = vmul.f32 %v1216, %v1234
        %v1256 = vmul.f32 %v1217, %v1234
        %v1257 = vmul.f32 %v1218, %v1234
        %v1258 = vmul.f32 %v1219, %v1234
        %v1259 = vmul.f32 %v1220, %v1234
        %v1260 = vmul.f32 %v1221, %v1234
        %v1261 = vmul.f32 %v1222, %v1234
        %v1262 = vmul.f32 %v1223, %v1234
        %v1263 = vmul.f32 %v1224, %v1234
        %v1264 = vmul.f32 %v1225, %v1234
        %v1265 = vmul.f32 %v1226, %v1234
        %v1267 = vlaneseq
        %v1268 = vshrl.u32 %v1267, 7
        %v1269 = vsub.s32 0, %v1268
        %v1270 = vrot.slane %v1230, %v1269
        %v1272 = vadd.f32 %v1235, %v1270
        %v1273 = vadd.f32 %v1236, %v1270
        %v1274 = vadd.f32 %v1237, %v1270
        %v1275 = vadd.f32 %v1238, %v1270
        %v1276 = vadd.f32 %v1239, %v1270
        %v1277 = vadd.f32 %v1240, %v1270
        %v1278 = vadd.f32 %v1241, %v1270
        %v1279 = vadd.f32 %v1242, %v1270
        %v1280 = vadd.f32 %v1243, %v1270
        %v1281 = vadd.f32 %v1244, %v1270
        %v1282 = vadd.f32 %v1245, %v1270
        %v1283 = vadd.f32 %v1246, %v1270
        %v1284 = vadd.f32 %v1247, %v1270
        %v1285 = vadd.f32 %v1248, %v1270
        %v1286 = vadd.f32 %v1249, %v1270
        %v1287 = vadd.f32 %v1250, %v1270
        %v1288 = vadd.f32 %v1251, %v1270
        %v1289 = vadd.f32 %v1252, %v1270
        %v1290 = vadd.f32 %v1253, %v1270
        %v1291 = vadd.f32 %v1254, %v1270
        %v1292 = vadd.f32 %v1255, %v1270
        %v1293 = vadd.f32 %v1256, %v1270
        %v1294 = vadd.f32 %v1257, %v1270
        %v1295 = vadd.f32 %v1258, %v1270
        %v1296 = vadd.f32 %v1259, %v1270
        %v1297 = vadd.f32 %v1260, %v1270
        %v1298 = vadd.f32 %v1261, %v1270
        %v1299 = vadd.f32 %v1262, %v1270
        %v1300 = vadd.f32 %v1263, %v1270
        %v1301 = vadd.f32 %v1264, %v1270
        %v1302 = vadd.f32 %v1265, %v1270
        %v1303 = vlaneseq
        %v1304 = vshrl.u32 %v1303, 7
        %v1305 = vsub.s32 1, %v1304
        %v1306 = vrot.slane %v1229, %v1305
        %v1307 = vmul.f32 %v1197, %v1306
        %v1308 = vmul.f32 %v1198, %v1306
        %v1309 = vmul.f32 %v1199, %v1306
        %v1310 = vmul.f32 %v1200, %v1306
        %v1311 = vmul.f32 %v1201, %v1306
        %v1312 = vmul.f32 %v1202, %v1306
        %v1313 = vmul.f32 %v1203, %v1306
        %v1314 = vmul.f32 %v1204, %v1306
        %v1315 = vmul.f32 %v1205, %v1306
        %v1316 = vmul.f32 %v1206, %v1306
        %v1317 = vmul.f32 %v1207, %v1306
        %v1318 = vmul.f32 %v1208, %v1306
        %v1319 = vmul.f32 %v1209, %v1306
        %v1320 = vmul.f32 %v1210, %v1306
        %v1321 = vmul.f32 %v1211, %v1306
        %v1322 = vmul.f32 %v1212, %v1306
        %v1323 = vmul.f32 %v1213, %v1306
        %v1324 = vmul.f32 %v1214, %v1306
        %v1325 = vmul.f32 %v1215, %v1306
        %v1326 = vmul.f32 %v1216, %v1306
        %v1327 = vmul.f32 %v1217, %v1306
        %v1328 = vmul.f32 %v1218, %v1306
        %v1329 = vmul.f32 %v1219, %v1306
        %v1330 = vmul.f32 %v1220, %v1306
        %v1331 = vmul.f32 %v1221, %v1306
        %v1332 = vmul.f32 %v1222, %v1306
        %v1333 = vmul.f32 %v1223, %v1306
        %v1334 = vmul.f32 %v1224, %v1306
        %v1335 = vmul.f32 %v1225, %v1306
        %v1336 = vmul.f32 %v1226, %v1306
        %v1337 = vmul.f32 %v1227, %v1306
        %v1338 = vmul.f32 %v1228, %v1306
        %v1339 = vadd.f32 %v1272, %v1307
        %v1340 = vadd.f32 %v1272, %v1308
        %v1341 = vadd.f32 %v1273, %v1309
        %v1342 = vadd.f32 %v1274, %v1310
        %v1343 = vadd.f32 %v1275, %v1311
        %v1344 = vadd.f32 %v1276, %v1312
        %v1345 = vadd.f32 %v1277, %v1313
        %v1346 = vadd.f32 %v1278, %v1314
        %v1347 = vadd.f32 %v1279, %v1315
        %v1348 = vadd.f32 %v1280, %v1316
        %v1349 = vadd.f32 %v1281, %v1317
        %v1350 = vadd.f32 %v1282, %v1318
        %v1351 = vadd.f32 %v1283, %v1319
        %v1352 = vadd.f32 %v1284, %v1320
        %v1353 = vadd.f32 %v1285, %v1321
        %v1354 = vadd.f32 %v1286, %v1322
        %v1355 = vadd.f32 %v1287, %v1323
        %v1356 = vadd.f32 %v1288, %v1324
        %v1357 = vadd.f32 %v1289, %v1325
        %v1358 = vadd.f32 %v1290, %v1326
        %v1359 = vadd.f32 %v1291, %v1327
        %v1360 = vadd.f32 %v1292, %v1328
        %v1361 = vadd.f32 %v1293, %v1329
        %v1362 = vadd.f32 %v1294, %v1330
        %v1363 = vadd.f32 %v1295, %v1331
        %v1364 = vadd.f32 %v1296, %v1332
        %v1365 = vadd.f32 %v1297, %v1333
        %v1366 = vadd.f32 %v1298, %v1334
        %v1367 = vadd.f32 %v1299, %v1335
        %v1368 = vadd.f32 %v1300, %v1336
        %v1369 = vadd.f32 %v1301, %v1337
        %v1370 = vadd.f32 %v1302, %v1338
        %v1371 = vlaneseq
        %v1372 = vshrl.u32 %v1371, 7
        %v1373 = vsub.s32 2, %v1372
        %v1374 = vrot.slane %v1229, %v1373
        %v1375 = vmul.f32 %v1199, %v1374
        %v1376 = vmul.f32 %v1200, %v1374
        %v1377 = vmul.f32 %v1201, %v1374
        %v1378 = vmul.f32 %v1202, %v1374
        %v1379 = vmul.f32 %v1203, %v1374
        %v1380 = vmul.f32 %v1204, %v1374
        %v1381 = vmul.f32 %v1205, %v1374
        %v1382 = vmul.f32 %v1206, %v1374
        %v1383 = vmul.f32 %v1207, %v1374
        %v1384 = vmul.f32 %v1208, %v1374
        %v1385 = vmul.f32 %v1209, %v1374
        %v1386 = vmul.f32 %v1210, %v1374
        %v1387 = vmul.f32 %v1211, %v1374
        %v1388 = vmul.f32 %v1212, %v1374
        %v1389 = vmul.f32 %v1213, %v1374
        %v1390 = vmul.f32 %v1214, %v1374
        %v1391 = vmul.f32 %v1215, %v1374
        %v1392 = vmul.f32 %v1216, %v1374
        %v1393 = vmul.f32 %v1217, %v1374
        %v1394 = vmul.f32 %v1218, %v1374
        %v1395 = vmul.f32 %v1219, %v1374
        %v1396 = vmul.f32 %v1220, %v1374
        %v1397 = vmul.f32 %v1221, %v1374
        %v1398 = vmul.f32 %v1222, %v1374
        %v1399 = vmul.f32 %v1223, %v1374
        %v1400 = vmul.f32 %v1224, %v1374
        %v1401 = vmul.f32 %v1225, %v1374
        %v1402 = vmul.f32 %v1226, %v1374
        %v1403 = vmul.f32 %v1227, %v1374
        %v1404 = vmul.f32 %v1228, %v1374
        %v1405 = vmul.f32 %v1374, 0.0
        %v1406 = vadd.f32 %v1339, %v1375
        %v1407 = vadd.f32 %v1340, %v1376
        %v1408 = vadd.f32 %v1341, %v1377
        %v1409 = vadd.f32 %v1342, %v1378
        %v1410 = vadd.f32 %v1343, %v1379
        %v1411 = vadd.f32 %v1344, %v1380
        %v1412 = vadd.f32 %v1345, %v1381
        %v1413 = vadd.f32 %v1346, %v1382
        %v1414 = vadd.f32 %v1347, %v1383
        %v1415 = vadd.f32 %v1348, %v1384
        %v1416 = vadd.f32 %v1349, %v1385
        %v1417 = vadd.f32 %v1350, %v1386
        %v1418 = vadd.f32 %v1351, %v1387
        %v1419 = vadd.f32 %v1352, %v1388
        %v1420 = vadd.f32 %v1353, %v1389
        %v1421 = vadd.f32 %v1354, %v1390
        %v1422 = vadd.f32 %v1355, %v1391
        %v1423 = vadd.f32 %v1356, %v1392
        %v1424 = vadd.f32 %v1357, %v1393
        %v1425 = vadd.f32 %v1358, %v1394
        %v1426 = vadd.f32 %v1359, %v1395
        %v1427 = vadd.f32 %v1360, %v1396
        %v1428 = vadd.f32 %v1361, %v1397
        %v1429 = vadd.f32 %v1362, %v1398
        %v1430 = vadd.f32 %v1363, %v1399
        %v1431 = vadd.f32 %v1364, %v1400
        %v1432 = vadd.f32 %v1365, %v1401
        %v1433 = vadd.f32 %v1366, %v1402
        %v1434 = vadd.f32 %v1367, %v1403
        %v1435 = vadd.f32 %v1368, %v1404
        %v1436 = vadd.f32 %v1369, %v1405
        %v1437 = vadd.f32 %v1370, %v1405
        %v1438 = vld [vmem:[%s5] sm:$0x7]
        %v1439 = vld [vmem:[#allocation10] sm:$0x1]
        %vm1472 = vcmask 1041408
        %v1473 = vrot.slane %v1406, 6
        %v1474 = vrot.slane %v1407, 6
        %v1475 = vsel %vm1472, %v1473, %v1474
        %v1476 = vrot.slane %v1408, 6
        %v1477 = vrot.slane %v1409, 6
        %v1478 = vsel %vm1472, %v1476, %v1477
        %v1479 = vrot.slane %v1410, 6
        %v1480 = vrot.slane %v1411, 6
        %v1481 = vsel %vm1472, %v1479, %v1480
        %v1482 = vrot.slane %v1412, 6
        %v1483 = vrot.slane %v1413, 6
        %v1484 = vsel %vm1472, %v1482, %v1483
        %v1485 = vrot.slane %v1414, 6
        %v1486 = vrot.slane %v1415, 6
        %v1487 = vsel %vm1472, %v1485, %v1486
        %v1488 = vrot.slane %v1416, 6
        %v1489 = vrot.slane %v1417, 6
        %v1490 = vsel %vm1472, %v1488, %v1489
        %v1491 = vrot.slane %v1418, 6
        %v1492 = vrot.slane %v1419, 6
        %v1493 = vsel %vm1472, %v1491, %v1492
        %v1494 = vrot.slane %v1420, 6
        %v1495 = vrot.slane %v1421, 6
        %v1496 = vsel %vm1472, %v1494, %v1495
        %v1497 = vrot.slane %v1422, 6
        %v1498 = vrot.slane %v1423, 6
        %v1499 = vsel %vm1472, %v1497, %v1498
        %v1500 = vrot.slane %v1424, 6
        %v1501 = vrot.slane %v1425, 6
        %v1502 = vsel %vm1472, %v1500, %v1501
        %v1503 = vrot.slane %v1426, 6
        %v1504 = vrot.slane %v1427, 6
        %v1505 = vsel %vm1472, %v1503, %v1504
        %v1506 = vrot.slane %v1428, 6
        %v1507 = vrot.slane %v1429, 6
        %v1508 = vsel %vm1472, %v1506, %v1507
        %v1509 = vrot.slane %v1430, 6
        %v1510 = vrot.slane %v1431, 6
        %v1511 = vsel %vm1472, %v1509, %v1510
        %v1512 = vrot.slane %v1432, 6
        %v1513 = vrot.slane %v1433, 6
        %v1514 = vsel %vm1472, %v1512, %v1513
        %v1515 = vrot.slane %v1434, 6
        %v1516 = vrot.slane %v1435, 6
        %v1517 = vsel %vm1472, %v1515, %v1516
        %v1518 = vrot.slane %v1436, 6
        %v1519 = vrot.slane %v1437, 6
        %v1520 = vsel %vm1472, %v1518, %v1519
        %v1569 = vsel %vm1472, 0.0, %v1473
        %v1570 = vsel %vm1472, 0.0, %v1476
        %v1571 = vsel %vm1472, 0.0, %v1479
        %v1572 = vsel %vm1472, 0.0, %v1482
        %v1573 = vsel %vm1472, 0.0, %v1485
        %v1574 = vsel %vm1472, 0.0, %v1488
        %v1575 = vsel %vm1472, 0.0, %v1491
        %v1576 = vsel %vm1472, 0.0, %v1494
        %v1577 = vsel %vm1472, 0.0, %v1497
        %v1578 = vsel %vm1472, 0.0, %v1500
        %v1579 = vsel %vm1472, 0.0, %v1503
        %v1580 = vsel %vm1472, 0.0, %v1506
        %v1581 = vsel %vm1472, 0.0, %v1509
        %v1582 = vsel %vm1472, 0.0, %v1512
        %v1583 = vsel %vm1472, 0.0, %v1515
        %v1584 = vsel %vm1472, 0.0, %v1518
        %v1585 = vsel %vm1472, %v1474, 0.0
        %v1586 = vsel %vm1472, %v1477, 0.0
        %v1587 = vsel %vm1472, %v1480, 0.0
        %v1588 = vsel %vm1472, %v1483, 0.0
        %v1589 = vsel %vm1472, %v1486, 0.0
        %v1590 = vsel %vm1472, %v1489, 0.0
        %v1591 = vsel %vm1472, %v1492, 0.0
        %v1592 = vsel %vm1472, %v1495, 0.0
        %v1593 = vsel %vm1472, %v1498, 0.0
        %v1594 = vsel %vm1472, %v1501, 0.0
        %v1595 = vsel %vm1472, %v1504, 0.0
        %v1596 = vsel %vm1472, %v1507, 0.0
        %v1597 = vsel %vm1472, %v1510, 0.0
        %v1598 = vsel %vm1472, %v1513, 0.0
        %v1599 = vsel %vm1472, %v1516, 0.0
        %v1600 = vsel %vm1472, %v1519, 0.0
        %v1601 = vlaneseq
        %v1602 = vshrl.u32 %v1601, 7
        %v1603 = vsub.s32 0, %v1602
        %v1604 = vrot.slane %v1438, %v1603
        %v1605 = vmul.f32 %v1569, %v1604
        %v1606 = vmul.f32 %v1475, %v1604
        %v1607 = vmul.f32 %v1570, %v1604
        %v1608 = vmul.f32 %v1478, %v1604
        %v1609 = vmul.f32 %v1571, %v1604
        %v1610 = vmul.f32 %v1481, %v1604
        %v1611 = vmul.f32 %v1572, %v1604
        %v1612 = vmul.f32 %v1484, %v1604
        %v1613 = vmul.f32 %v1573, %v1604
        %v1614 = vmul.f32 %v1487, %v1604
        %v1615 = vmul.f32 %v1574, %v1604
        %v1616 = vmul.f32 %v1490, %v1604
        %v1617 = vmul.f32 %v1575, %v1604
        %v1618 = vmul.f32 %v1493, %v1604
        %v1619 = vmul.f32 %v1576, %v1604
        %v1620 = vmul.f32 %v1496, %v1604
        %v1621 = vmul.f32 %v1577, %v1604
        %v1622 = vmul.f32 %v1499, %v1604
        %v1623 = vmul.f32 %v1578, %v1604
        %v1624 = vmul.f32 %v1502, %v1604
        %v1625 = vmul.f32 %v1579, %v1604
        %v1626 = vmul.f32 %v1505, %v1604
        %v1627 = vmul.f32 %v1580, %v1604
        %v1628 = vmul.f32 %v1508, %v1604
        %v1629 = vmul.f32 %v1581, %v1604
        %v1630 = vmul.f32 %v1511, %v1604
        %v1631 = vmul.f32 %v1582, %v1604
        %v1632 = vmul.f32 %v1514, %v1604
        %v1633 = vmul.f32 %v1583, %v1604
        %v1634 = vmul.f32 %v1517, %v1604
        %v1635 = vmul.f32 %v1584, %v1604
        %v1636 = vmul.f32 %v1520, %v1604
        %v1638 = vlaneseq
        %v1639 = vshrl.u32 %v1638, 7
        %v1640 = vsub.s32 0, %v1639
        %v1641 = vrot.slane %v1439, %v1640
        %v1643 = vadd.f32 %v1605, %v1641
        %v1644 = vadd.f32 %v1606, %v1641
        %v1645 = vadd.f32 %v1607, %v1641
        %v1646 = vadd.f32 %v1608, %v1641
        %v1647 = vadd.f32 %v1609, %v1641
        %v1648 = vadd.f32 %v1610, %v1641
        %v1649 = vadd.f32 %v1611, %v1641
        %v1650 = vadd.f32 %v1612, %v1641
        %v1651 = vadd.f32 %v1613, %v1641
        %v1652 = vadd.f32 %v1614, %v1641
        %v1653 = vadd.f32 %v1615, %v1641
        %v1654 = vadd.f32 %v1616, %v1641
        %v1655 = vadd.f32 %v1617, %v1641
        %v1656 = vadd.f32 %v1618, %v1641
        %v1657 = vadd.f32 %v1619, %v1641
        %v1658 = vadd.f32 %v1620, %v1641
        %v1659 = vadd.f32 %v1621, %v1641
        %v1660 = vadd.f32 %v1622, %v1641
        %v1661 = vadd.f32 %v1623, %v1641
        %v1662 = vadd.f32 %v1624, %v1641
        %v1663 = vadd.f32 %v1625, %v1641
        %v1664 = vadd.f32 %v1626, %v1641
        %v1665 = vadd.f32 %v1627, %v1641
        %v1666 = vadd.f32 %v1628, %v1641
        %v1667 = vadd.f32 %v1629, %v1641
        %v1668 = vadd.f32 %v1630, %v1641
        %v1669 = vadd.f32 %v1631, %v1641
        %v1670 = vadd.f32 %v1632, %v1641
        %v1671 = vadd.f32 %v1633, %v1641
        %v1672 = vadd.f32 %v1634, %v1641
        %v1673 = vadd.f32 %v1635, %v1641
        %v1674 = vadd.f32 %v1636, %v1641
        %v1675 = vlaneseq
        %v1676 = vshrl.u32 %v1675, 7
        %v1677 = vsub.s32 1, %v1676
        %v1678 = vrot.slane %v1438, %v1677
        %v1679 = vmul.f32 %v1569, %v1678
        %v1680 = vmul.f32 %v1475, %v1678
        %v1681 = vmul.f32 %v1585, %v1678
        %v1682 = vmul.f32 %v1570, %v1678
        %v1683 = vmul.f32 %v1478, %v1678
        %v1684 = vmul.f32 %v1586, %v1678
        %v1685 = vmul.f32 %v1571, %v1678
        %v1686 = vmul.f32 %v1481, %v1678
        %v1687 = vmul.f32 %v1587, %v1678
        %v1688 = vmul.f32 %v1572, %v1678
        %v1689 = vmul.f32 %v1484, %v1678
        %v1690 = vmul.f32 %v1588, %v1678
        %v1691 = vmul.f32 %v1573, %v1678
        %v1692 = vmul.f32 %v1487, %v1678
        %v1693 = vmul.f32 %v1589, %v1678
        %v1694 = vmul.f32 %v1574, %v1678
        %v1695 = vmul.f32 %v1490, %v1678
        %v1696 = vmul.f32 %v1590, %v1678
        %v1697 = vmul.f32 %v1575, %v1678
        %v1698 = vmul.f32 %v1493, %v1678
        %v1699 = vmul.f32 %v1591, %v1678
        %v1700 = vmul.f32 %v1576, %v1678
        %v1701 = vmul.f32 %v1496, %v1678
        %v1702 = vmul.f32 %v1592, %v1678
        %v1703 = vmul.f32 %v1577, %v1678
        %v1704 = vmul.f32 %v1499, %v1678
        %v1705 = vmul.f32 %v1593, %v1678
        %v1706 = vmul.f32 %v1578, %v1678
        %v1707 = vmul.f32 %v1502, %v1678
        %v1708 = vmul.f32 %v1594, %v1678
        %v1709 = vmul.f32 %v1579, %v1678
        %v1710 = vmul.f32 %v1505, %v1678
        %v1711 = vmul.f32 %v1595, %v1678
        %v1712 = vmul.f32 %v1580, %v1678
        %v1713 = vmul.f32 %v1508, %v1678
        %v1714 = vmul.f32 %v1596, %v1678
        %v1715 = vmul.f32 %v1581, %v1678
        %v1716 = vmul.f32 %v1511, %v1678
        %v1717 = vmul.f32 %v1597, %v1678
        %v1718 = vmul.f32 %v1582, %v1678
        %v1719 = vmul.f32 %v1514, %v1678
        %v1720 = vmul.f32 %v1598, %v1678
        %v1721 = vmul.f32 %v1583, %v1678
        %v1722 = vmul.f32 %v1517, %v1678
        %v1723 = vmul.f32 %v1599, %v1678
        %v1724 = vmul.f32 %v1584, %v1678
        %v1725 = vmul.f32 %v1520, %v1678
        %v1726 = vmul.f32 %v1600, %v1678
        %v1775 = vrot.slane %v1679, 2
        %v1776 = vrot.slane %v1680, 2
        %v1777 = vsel %vm1084, %v1775, %v1776
        %v1778 = vrot.slane %v1681, 2
        %v1779 = vsel %vm1084, %v1776, %v1778
        %v1780 = vrot.slane %v1682, 2
        %v1781 = vrot.slane %v1683, 2
        %v1782 = vsel %vm1084, %v1780, %v1781
        %v1783 = vrot.slane %v1684, 2
        %v1784 = vsel %vm1084, %v1781, %v1783
        %v1785 = vrot.slane %v1685, 2
        %v1786 = vrot.slane %v1686, 2
        %v1787 = vsel %vm1084, %v1785, %v1786
        %v1788 = vrot.slane %v1687, 2
        %v1789 = vsel %vm1084, %v1786, %v1788
        %v1790 = vrot.slane %v1688, 2
        %v1791 = vrot.slane %v1689, 2
        %v1792 = vsel %vm1084, %v1790, %v1791
        %v1793 = vrot.slane %v1690, 2
        %v1794 = vsel %vm1084, %v1791, %v1793
        %v1795 = vrot.slane %v1691, 2
        %v1796 = vrot.slane %v1692, 2
        %v1797 = vsel %vm1084, %v1795, %v1796
        %v1798 = vrot.slane %v1693, 2
        %v1799 = vsel %vm1084, %v1796, %v1798
        %v1800 = vrot.slane %v1694, 2
        %v1801 = vrot.slane %v1695, 2
        %v1802 = vsel %vm1084, %v1800, %v1801
        %v1803 = vrot.slane %v1696, 2
        %v1804 = vsel %vm1084, %v1801, %v1803
        %v1805 = vrot.slane %v1697, 2
        %v1806 = vrot.slane %v1698, 2
        %v1807 = vsel %vm1084, %v1805, %v1806
        %v1808 = vrot.slane %v1699, 2
        %v1809 = vsel %vm1084, %v1806, %v1808
        %v1810 = vrot.slane %v1700, 2
        %v1811 = vrot.slane %v1701, 2
        %v1812 = vsel %vm1084, %v1810, %v1811
        %v1813 = vrot.slane %v1702, 2
        %v1814 = vsel %vm1084, %v1811, %v1813
        %v1815 = vrot.slane %v1703, 2
        %v1816 = vrot.slane %v1704, 2
        %v1817 = vsel %vm1084, %v1815, %v1816
        %v1818 = vrot.slane %v1705, 2
        %v1819 = vsel %vm1084, %v1816, %v1818
        %v1820 = vrot.slane %v1706, 2
        %v1821 = vrot.slane %v1707, 2
        %v1822 = vsel %vm1084, %v1820, %v1821
        %v1823 = vrot.slane %v1708, 2
        %v1824 = vsel %vm1084, %v1821, %v1823
        %v1825 = vrot.slane %v1709, 2
        %v1826 = vrot.slane %v1710, 2
        %v1827 = vsel %vm1084, %v1825, %v1826
        %v1828 = vrot.slane %v1711, 2
        %v1829 = vsel %vm1084, %v1826, %v1828
        %v1830 = vrot.slane %v1712, 2
        %v1831 = vrot.slane %v1713, 2
        %v1832 = vsel %vm1084, %v1830, %v1831
        %v1833 = vrot.slane %v1714, 2
        %v1834 = vsel %vm1084, %v1831, %v1833
        %v1835 = vrot.slane %v1715, 2
        %v1836 = vrot.slane %v1716, 2
        %v1837 = vsel %vm1084, %v1835, %v1836
        %v1838 = vrot.slane %v1717, 2
        %v1839 = vsel %vm1084, %v1836, %v1838
        %v1840 = vrot.slane %v1718, 2
        %v1841 = vrot.slane %v1719, 2
        %v1842 = vsel %vm1084, %v1840, %v1841
        %v1843 = vrot.slane %v1720, 2
        %v1844 = vsel %vm1084, %v1841, %v1843
        %v1845 = vrot.slane %v1721, 2
        %v1846 = vrot.slane %v1722, 2
        %v1847 = vsel %vm1084, %v1845, %v1846
        %v1848 = vrot.slane %v1723, 2
        %v1849 = vsel %vm1084, %v1846, %v1848
        %v1850 = vrot.slane %v1724, 2
        %v1851 = vrot.slane %v1725, 2
        %v1852 = vsel %vm1084, %v1850, %v1851
        %v1853 = vrot.slane %v1726, 2
        %v1854 = vsel %vm1084, %v1851, %v1853
        %v1887 = vadd.f32 %v1643, %v1777
        %v1888 = vadd.f32 %v1644, %v1779
        %v1889 = vadd.f32 %v1645, %v1782
        %v1890 = vadd.f32 %v1646, %v1784
        %v1891 = vadd.f32 %v1647, %v1787
        %v1892 = vadd.f32 %v1648, %v1789
        %v1893 = vadd.f32 %v1649, %v1792
        %v1894 = vadd.f32 %v1650, %v1794
        %v1895 = vadd.f32 %v1651, %v1797
        %v1896 = vadd.f32 %v1652, %v1799
        %v1897 = vadd.f32 %v1653, %v1802
        %v1898 = vadd.f32 %v1654, %v1804
        %v1899 = vadd.f32 %v1655, %v1807
        %v1900 = vadd.f32 %v1656, %v1809
        %v1901 = vadd.f32 %v1657, %v1812
        %v1902 = vadd.f32 %v1658, %v1814
        %v1903 = vadd.f32 %v1659, %v1817
        %v1904 = vadd.f32 %v1660, %v1819
        %v1905 = vadd.f32 %v1661, %v1822
        %v1906 = vadd.f32 %v1662, %v1824
        %v1907 = vadd.f32 %v1663, %v1827
        %v1908 = vadd.f32 %v1664, %v1829
        %v1909 = vadd.f32 %v1665, %v1832
        %v1910 = vadd.f32 %v1666, %v1834
        %v1911 = vadd.f32 %v1667, %v1837
        %v1912 = vadd.f32 %v1668, %v1839
        %v1913 = vadd.f32 %v1669, %v1842
        %v1914 = vadd.f32 %v1670, %v1844
        %v1915 = vadd.f32 %v1671, %v1847
        %v1916 = vadd.f32 %v1672, %v1849
        %v1917 = vadd.f32 %v1673, %v1852
        %v1918 = vadd.f32 %v1674, %v1854
        %v1919 = vlaneseq
        %v1920 = vshrl.u32 %v1919, 7
        %v1921 = vsub.s32 2, %v1920
        %v1922 = vrot.slane %v1438, %v1921
        %v1923 = vmul.f32 %v1569, %v1922
        %v1924 = vmul.f32 %v1475, %v1922
        %v1925 = vmul.f32 %v1585, %v1922
        %v1926 = vmul.f32 %v1570, %v1922
        %v1927 = vmul.f32 %v1478, %v1922
        %v1928 = vmul.f32 %v1586, %v1922
        %v1929 = vmul.f32 %v1571, %v1922
        %v1930 = vmul.f32 %v1481, %v1922
        %v1931 = vmul.f32 %v1587, %v1922
        %v1932 = vmul.f32 %v1572, %v1922
        %v1933 = vmul.f32 %v1484, %v1922
        %v1934 = vmul.f32 %v1588, %v1922
        %v1935 = vmul.f32 %v1573, %v1922
        %v1936 = vmul.f32 %v1487, %v1922
        %v1937 = vmul.f32 %v1589, %v1922
        %v1938 = vmul.f32 %v1574, %v1922
        %v1939 = vmul.f32 %v1490, %v1922
        %v1940 = vmul.f32 %v1590, %v1922
        %v1941 = vmul.f32 %v1575, %v1922
        %v1942 = vmul.f32 %v1493, %v1922
        %v1943 = vmul.f32 %v1591, %v1922
        %v1944 = vmul.f32 %v1576, %v1922
        %v1945 = vmul.f32 %v1496, %v1922
        %v1946 = vmul.f32 %v1592, %v1922
        %v1947 = vmul.f32 %v1577, %v1922
        %v1948 = vmul.f32 %v1499, %v1922
        %v1949 = vmul.f32 %v1593, %v1922
        %v1950 = vmul.f32 %v1578, %v1922
        %v1951 = vmul.f32 %v1502, %v1922
        %v1952 = vmul.f32 %v1594, %v1922
        %v1953 = vmul.f32 %v1579, %v1922
        %v1954 = vmul.f32 %v1505, %v1922
        %v1955 = vmul.f32 %v1595, %v1922
        %v1956 = vmul.f32 %v1580, %v1922
        %v1957 = vmul.f32 %v1508, %v1922
        %v1958 = vmul.f32 %v1596, %v1922
        %v1959 = vmul.f32 %v1581, %v1922
        %v1960 = vmul.f32 %v1511, %v1922
        %v1961 = vmul.f32 %v1597, %v1922
        %v1962 = vmul.f32 %v1582, %v1922
        %v1963 = vmul.f32 %v1514, %v1922
        %v1964 = vmul.f32 %v1598, %v1922
        %v1965 = vmul.f32 %v1583, %v1922
        %v1966 = vmul.f32 %v1517, %v1922
        %v1967 = vmul.f32 %v1599, %v1922
        %v1968 = vmul.f32 %v1584, %v1922
        %v1969 = vmul.f32 %v1520, %v1922
        %v1970 = vmul.f32 %v1600, %v1922
        %vm2019 = vcmask 1043456
        %v2020 = vrot.slane %v1923, 4
        %v2021 = vrot.slane %v1924, 4
        %v2022 = vsel %vm2019, %v2020, %v2021
        %v2023 = vrot.slane %v1925, 4
        %v2024 = vsel %vm2019, %v2021, %v2023
        %v2025 = vrot.slane %v1926, 4
        %v2026 = vrot.slane %v1927, 4
        %v2027 = vsel %vm2019, %v2025, %v2026
        %v2028 = vrot.slane %v1928, 4
        %v2029 = vsel %vm2019, %v2026, %v2028
        %v2030 = vrot.slane %v1929, 4
        %v2031 = vrot.slane %v1930, 4
        %v2032 = vsel %vm2019, %v2030, %v2031
        %v2033 = vrot.slane %v1931, 4
        %v2034 = vsel %vm2019, %v2031, %v2033
        %v2035 = vrot.slane %v1932, 4
        %v2036 = vrot.slane %v1933, 4
        %v2037 = vsel %vm2019, %v2035, %v2036
        %v2038 = vrot.slane %v1934, 4
        %v2039 = vsel %vm2019, %v2036, %v2038
        %v2040 = vrot.slane %v1935, 4
        %v2041 = vrot.slane %v1936, 4
        %v2042 = vsel %vm2019, %v2040, %v2041
        %v2043 = vrot.slane %v1937, 4
        %v2044 = vsel %vm2019, %v2041, %v2043
        %v2045 = vrot.slane %v1938, 4
        %v2046 = vrot.slane %v1939, 4
        %v2047 = vsel %vm2019, %v2045, %v2046
        %v2048 = vrot.slane %v1940, 4
        %v2049 = vsel %vm2019, %v2046, %v2048
        %v2050 = vrot.slane %v1941, 4
        %v2051 = vrot.slane %v1942, 4
        %v2052 = vsel %vm2019, %v2050, %v2051
        %v2053 = vrot.slane %v1943, 4
        %v2054 = vsel %vm2019, %v2051, %v2053
        %v2055 = vrot.slane %v1944, 4
        %v2056 = vrot.slane %v1945, 4
        %v2057 = vsel %vm2019, %v2055, %v2056
        %v2058 = vrot.slane %v1946, 4
        %v2059 = vsel %vm2019, %v2056, %v2058
        %v2060 = vrot.slane %v1947, 4
        %v2061 = vrot.slane %v1948, 4
        %v2062 = vsel %vm2019, %v2060, %v2061
        %v2063 = vrot.slane %v1949, 4
        %v2064 = vsel %vm2019, %v2061, %v2063
        %v2065 = vrot.slane %v1950, 4
        %v2066 = vrot.slane %v1951, 4
        %v2067 = vsel %vm2019, %v2065, %v2066
        %v2068 = vrot.slane %v1952, 4
        %v2069 = vsel %vm2019, %v2066, %v2068
        %v2070 = vrot.slane %v1953, 4
        %v2071 = vrot.slane %v1954, 4
        %v2072 = vsel %vm2019, %v2070, %v2071
        %v2073 = vrot.slane %v1955, 4
        %v2074 = vsel %vm2019, %v2071, %v2073
        %v2075 = vrot.slane %v1956, 4
        %v2076 = vrot.slane %v1957, 4
        %v2077 = vsel %vm2019, %v2075, %v2076
        %v2078 = vrot.slane %v1958, 4
        %v2079 = vsel %vm2019, %v2076, %v2078
        %v2080 = vrot.slane %v1959, 4
        %v2081 = vrot.slane %v1960, 4
        %v2082 = vsel %vm2019, %v2080, %v2081
        %v2083 = vrot.slane %v1961, 4
        %v2084 = vsel %vm2019, %v2081, %v2083
        %v2085 = vrot.slane %v1962, 4
        %v2086 = vrot.slane %v1963, 4
        %v2087 = vsel %vm2019, %v2085, %v2086
        %v2088 = vrot.slane %v1964, 4
        %v2089 = vsel %vm2019, %v2086, %v2088
        %v2090 = vrot.slane %v1965, 4
        %v2091 = vrot.slane %v1966, 4
        %v2092 = vsel %vm2019, %v2090, %v2091
        %v2093 = vrot.slane %v1967, 4
        %v2094 = vsel %vm2019, %v2091, %v2093
        %v2095 = vrot.slane %v1968, 4
        %v2096 = vrot.slane %v1969, 4
        %v2097 = vsel %vm2019, %v2095, %v2096
        %v2098 = vrot.slane %v1970, 4
        %v2099 = vsel %vm2019, %v2096, %v2098
        %v2132 = vadd.f32 %v1887, %v2022
        %v2133 = vadd.f32 %v1888, %v2024
        %v2134 = vadd.f32 %v1889, %v2027
        %v2135 = vadd.f32 %v1890, %v2029
        %v2136 = vadd.f32 %v1891, %v2032
        %v2137 = vadd.f32 %v1892, %v2034
        %v2138 = vadd.f32 %v1893, %v2037
        %v2139 = vadd.f32 %v1894, %v2039
        %v2140 = vadd.f32 %v1895, %v2042
        %v2141 = vadd.f32 %v1896, %v2044
        %v2142 = vadd.f32 %v1897, %v2047
        %v2143 = vadd.f32 %v1898, %v2049
        %v2144 = vadd.f32 %v1899, %v2052
        %v2145 = vadd.f32 %v1900, %v2054
        %v2146 = vadd.f32 %v1901, %v2057
        %v2147 = vadd.f32 %v1902, %v2059
        %v2148 = vadd.f32 %v1903, %v2062
        %v2149 = vadd.f32 %v1904, %v2064
        %v2150 = vadd.f32 %v1905, %v2067
        %v2151 = vadd.f32 %v1906, %v2069
        %v2152 = vadd.f32 %v1907, %v2072
        %v2153 = vadd.f32 %v1908, %v2074
        %v2154 = vadd.f32 %v1909, %v2077
        %v2155 = vadd.f32 %v1910, %v2079
        %v2156 = vadd.f32 %v1911, %v2082
        %v2157 = vadd.f32 %v1912, %v2084
        %v2158 = vadd.f32 %v1913, %v2087
        %v2159 = vadd.f32 %v1914, %v2089
        %v2160 = vadd.f32 %v1915, %v2092
        %v2161 = vadd.f32 %v1916, %v2094
        %v2162 = vadd.f32 %v1917, %v2097
        %v2163 = vadd.f32 %v1918, %v2099
        %v2164 = vld [vmem:[%s7] sm:$0x7]
        %v2165 = vld [vmem:[%s8] sm:$0x1]
        %v2166 = vlaneseq
        %v2167 = vshrl.u32 %v2166, 7
        %v2168 = vsub.s32 0, %v2167
        %v2169 = vrot.slane %v2164, %v2168
        %v2170 = vmul.f32 %v2169, 0.0
        %v2171 = vmul.f32 %v2132, %v2169
        %v2172 = vmul.f32 %v2133, %v2169
        %v2173 = vmul.f32 %v2134, %v2169
        %v2174 = vmul.f32 %v2135, %v2169
        %v2175 = vmul.f32 %v2136, %v2169
        %v2176 = vmul.f32 %v2137, %v2169
        %v2177 = vmul.f32 %v2138, %v2169
        %v2178 = vmul.f32 %v2139, %v2169
        %v2179 = vmul.f32 %v2140, %v2169
        %v2180 = vmul.f32 %v2141, %v2169
        %v2181 = vmul.f32 %v2142, %v2169
        %v2182 = vmul.f32 %v2143, %v2169
        %v2183 = vmul.f32 %v2144, %v2169
        %v2184 = vmul.f32 %v2145, %v2169
        %v2185 = vmul.f32 %v2146, %v2169
        %v2186 = vmul.f32 %v2147, %v2169
        %v2187 = vmul.f32 %v2148, %v2169
        %v2188 = vmul.f32 %v2149, %v2169
        %v2189 = vmul.f32 %v2150, %v2169
        %v2190 = vmul.f32 %v2151, %v2169
        %v2191 = vmul.f32 %v2152, %v2169
        %v2192 = vmul.f32 %v2153, %v2169
        %v2193 = vmul.f32 %v2154, %v2169
        %v2194 = vmul.f32 %v2155, %v2169
        %v2195 = vmul.f32 %v2156, %v2169
        %v2196 = vmul.f32 %v2157, %v2169
        %v2197 = vmul.f32 %v2158, %v2169
        %v2198 = vmul.f32 %v2159, %v2169
        %v2200 = vlaneseq
        %v2201 = vshrl.u32 %v2200, 7
        %v2202 = vsub.s32 0, %v2201
        %v2203 = vrot.slane %v2165, %v2202
        %v2205 = vadd.f32 %v2170, %v2203
        %v2206 = vadd.f32 %v2171, %v2203
        %v2207 = vadd.f32 %v2172, %v2203
        %v2208 = vadd.f32 %v2173, %v2203
        %v2209 = vadd.f32 %v2174, %v2203
        %v2210 = vadd.f32 %v2175, %v2203
        %v2211 = vadd.f32 %v2176, %v2203
        %v2212 = vadd.f32 %v2177, %v2203
        %v2213 = vadd.f32 %v2178, %v2203
        %v2214 = vadd.f32 %v2179, %v2203
        %v2215 = vadd.f32 %v2180, %v2203
        %v2216 = vadd.f32 %v2181, %v2203
        %v2217 = vadd.f32 %v2182, %v2203
        %v2218 = vadd.f32 %v2183, %v2203
        %v2219 = vadd.f32 %v2184, %v2203
        %v2220 = vadd.f32 %v2185, %v2203
        %v2221 = vadd.f32 %v2186, %v2203
        %v2222 = vadd.f32 %v2187, %v2203
        %v2223 = vadd.f32 %v2188, %v2203
        %v2224 = vadd.f32 %v2189, %v2203
        %v2225 = vadd.f32 %v2190, %v2203
        %v2226 = vadd.f32 %v2191, %v2203
        %v2227 = vadd.f32 %v2192, %v2203
        %v2228 = vadd.f32 %v2193, %v2203
        %v2229 = vadd.f32 %v2194, %v2203
        %v2230 = vadd.f32 %v2195, %v2203
        %v2231 = vadd.f32 %v2196, %v2203
        %v2232 = vadd.f32 %v2197, %v2203
        %v2233 = vadd.f32 %v2198, %v2203
        %v2234 = vlaneseq
        %v2235 = vshrl.u32 %v2234, 7
        %v2236 = vsub.s32 1, %v2235
        %v2237 = vrot.slane %v2164, %v2236
        %v2238 = vmul.f32 %v2132, %v2237
        %v2239 = vmul.f32 %v2133, %v2237
        %v2240 = vmul.f32 %v2134, %v2237
        %v2241 = vmul.f32 %v2135, %v2237
        %v2242 = vmul.f32 %v2136, %v2237
        %v2243 = vmul.f32 %v2137, %v2237
        %v2244 = vmul.f32 %v2138, %v2237
        %v2245 = vmul.f32 %v2139, %v2237
        %v2246 = vmul.f32 %v2140, %v2237
        %v2247 = vmul.f32 %v2141, %v2237
        %v2248 = vmul.f32 %v2142, %v2237
        %v2249 = vmul.f32 %v2143, %v2237
        %v2250 = vmul.f32 %v2144, %v2237
        %v2251 = vmul.f32 %v2145, %v2237
        %v2252 = vmul.f32 %v2146, %v2237
        %v2253 = vmul.f32 %v2147, %v2237
        %v2254 = vmul.f32 %v2148, %v2237
        %v2255 = vmul.f32 %v2149, %v2237
        %v2256 = vmul.f32 %v2150, %v2237
        %v2257 = vmul.f32 %v2151, %v2237
        %v2258 = vmul.f32 %v2152, %v2237
        %v2259 = vmul.f32 %v2153, %v2237
        %v2260 = vmul.f32 %v2154, %v2237
        %v2261 = vmul.f32 %v2155, %v2237
        %v2262 = vmul.f32 %v2156, %v2237
        %v2263 = vmul.f32 %v2157, %v2237
        %v2264 = vmul.f32 %v2158, %v2237
        %v2265 = vmul.f32 %v2159, %v2237
        %v2266 = vmul.f32 %v2160, %v2237
        %v2267 = vmul.f32 %v2161, %v2237
        %v2268 = vmul.f32 %v2162, %v2237
        %v2269 = vmul.f32 %v2163, %v2237
        %v2270 = vadd.f32 %v2205, %v2238
        %v2271 = vadd.f32 %v2205, %v2239
        %v2272 = vadd.f32 %v2205, %v2240
        %v2273 = vadd.f32 %v2205, %v2241
        %v2274 = vadd.f32 %v2206, %v2242
        %v2275 = vadd.f32 %v2207, %v2243
        %v2276 = vadd.f32 %v2208, %v2244
        %v2277 = vadd.f32 %v2209, %v2245
        %v2278 = vadd.f32 %v2210, %v2246
        %v2279 = vadd.f32 %v2211, %v2247
        %v2280 = vadd.f32 %v2212, %v2248
        %v2281 = vadd.f32 %v2213, %v2249
        %v2282 = vadd.f32 %v2214, %v2250
        %v2283 = vadd.f32 %v2215, %v2251
        %v2284 = vadd.f32 %v2216, %v2252
        %v2285 = vadd.f32 %v2217, %v2253
        %v2286 = vadd.f32 %v2218, %v2254
        %v2287 = vadd.f32 %v2219, %v2255
        %v2288 = vadd.f32 %v2220, %v2256
        %v2289 = vadd.f32 %v2221, %v2257
        %v2290 = vadd.f32 %v2222, %v2258
        %v2291 = vadd.f32 %v2223, %v2259
        %v2292 = vadd.f32 %v2224, %v2260
        %v2293 = vadd.f32 %v2225, %v2261
        %v2294 = vadd.f32 %v2226, %v2262
        %v2295 = vadd.f32 %v2227, %v2263
        %v2296 = vadd.f32 %v2228, %v2264
        %v2297 = vadd.f32 %v2229, %v2265
        %v2298 = vadd.f32 %v2230, %v2266
        %v2299 = vadd.f32 %v2231, %v2267
        %v2300 = vadd.f32 %v2232, %v2268
        %v2301 = vadd.f32 %v2233, %v2269
        %v2302 = vlaneseq
        %v2303 = vshrl.u32 %v2302, 7
        %v2304 = vsub.s32 2, %v2303
        %v2305 = vrot.slane %v2164, %v2304
        %v2306 = vmul.f32 %v2136, %v2305
        %v2307 = vmul.f32 %v2137, %v2305
        %v2308 = vmul.f32 %v2138, %v2305
        %v2309 = vmul.f32 %v2139, %v2305
        %v2310 = vmul.f32 %v2140, %v2305
        %v2311 = vmul.f32 %v2141, %v2305
        %v2312 = vmul.f32 %v2142, %v2305
        %v2313 = vmul.f32 %v2143, %v2305
        %v2314 = vmul.f32 %v2144, %v2305
        %v2315 = vmul.f32 %v2145, %v2305
        %v2316 = vmul.f32 %v2146, %v2305
        %v2317 = vmul.f32 %v2147, %v2305
        %v2318 = vmul.f32 %v2148, %v2305
        %v2319 = vmul.f32 %v2149, %v2305
        %v2320 = vmul.f32 %v2150, %v2305
        %v2321 = vmul.f32 %v2151, %v2305
        %v2322 = vmul.f32 %v2152, %v2305
        %v2323 = vmul.f32 %v2153, %v2305
        %v2324 = vmul.f32 %v2154, %v2305
        %v2325 = vmul.f32 %v2155, %v2305
        %v2326 = vmul.f32 %v2156, %v2305
        %v2327 = vmul.f32 %v2157, %v2305
        %v2328 = vmul.f32 %v2158, %v2305
        %v2329 = vmul.f32 %v2159, %v2305
        %v2330 = vmul.f32 %v2160, %v2305
        %v2331 = vmul.f32 %v2161, %v2305
        %v2332 = vmul.f32 %v2162, %v2305
        %v2333 = vmul.f32 %v2163, %v2305
        %v2334 = vmul.f32 %v2305, 0.0
        %v2335 = vadd.f32 %v2270, %v2306
        %v2336 = vadd.f32 %v2271, %v2307
        %v2337 = vadd.f32 %v2272, %v2308
        %v2338 = vadd.f32 %v2273, %v2309
        %v2339 = vadd.f32 %v2274, %v2310
        %v2340 = vadd.f32 %v2275, %v2311
        %v2341 = vadd.f32 %v2276, %v2312
        %v2342 = vadd.f32 %v2277, %v2313
        %v2343 = vadd.f32 %v2278, %v2314
        %v2344 = vadd.f32 %v2279, %v2315
        %v2345 = vadd.f32 %v2280, %v2316
        %v2346 = vadd.f32 %v2281, %v2317
        %v2347 = vadd.f32 %v2282, %v2318
        %v2348 = vadd.f32 %v2283, %v2319
        %v2349 = vadd.f32 %v2284, %v2320
        %v2350 = vadd.f32 %v2285, %v2321
        %v2351 = vadd.f32 %v2286, %v2322
        %v2352 = vadd.f32 %v2287, %v2323
        %v2353 = vadd.f32 %v2288, %v2324
        %v2354 = vadd.f32 %v2289, %v2325
        %v2355 = vadd.f32 %v2290, %v2326
        %v2356 = vadd.f32 %v2291, %v2327
        %v2357 = vadd.f32 %v2292, %v2328
        %v2358 = vadd.f32 %v2293, %v2329
        %v2359 = vadd.f32 %v2294, %v2330
        %v2360 = vadd.f32 %v2295, %v2331
        %v2361 = vadd.f32 %v2296, %v2332
        %v2362 = vadd.f32 %v2297, %v2333
        %v2363 = vadd.f32 %v2298, %v2334
        %v2364 = vadd.f32 %v2299, %v2334
        %v2365 = vadd.f32 %v2300, %v2334
        %v2366 = vadd.f32 %v2301, %v2334
        %v2367 = vld [vmem:[#allocation11] sm:$0xff]
        %v2368 = vld [vmem:[#allocation11 + $0x8] sm:$0xff]
        %v2369 = vld [vmem:[#allocation11 + $0x10] sm:$0xff]
        %v2370 = vld [vmem:[#allocation11 + $0x18] sm:$0xff]
        %v2371 = vld [vmem:[#allocation11 + $0x20] sm:$0xff]
        %v2372 = vld [vmem:[#allocation11 + $0x28] sm:$0xff]
        %v2373 = vld [vmem:[#allocation11 + $0x30] sm:$0xff]
        %v2374 = vld [vmem:[#allocation11 + $0x38] sm:$0xff]
        %v2375 = vld [vmem:[#allocation11 + $0x40] sm:$0xff]
        %v2376 = vld [vmem:[#allocation11 + $0x48] sm:$0xff]
        %v2377 = vld [vmem:[#allocation11 + $0x50] sm:$0xff]
        %v2378 = vld [vmem:[#allocation11 + $0x58] sm:$0xff]
        %v2379 = vld [vmem:[#allocation11 + $0x60] sm:$0xff]
        %v2380 = vld [vmem:[#allocation11 + $0x68] sm:$0xff]
        %v2381 = vld [vmem:[#allocation11 + $0x70] sm:$0xff]
        %v2382 = vld [vmem:[#allocation11 + $0x78] sm:$0xff]
        %v2383 = vld [vmem:[%s10] sm:$0x1]
        %v2385 = vlaneseq
        %v2386 = vshrl.u32 %v2385, 7
        %v2387 = vsub.s32 0, %v2386
        %v2388 = vrot.slane %v2383, %v2387
        %2390 = vmatprep.subr.mxu0 0.0
        %2391 = vmatpush1.msra.mxu0 %v2382
        %2392 = vmatprep.subr.mxu0 0.0
        %2393 = vmatpush1.msra.mxu0 %v2381
        %2394 = vmatprep.subr.mxu0 0.0
        %2395 = vmatpush1.msra.mxu0 %v2380
        %2396 = vmatprep.subr.mxu0 0.0
        %2397 = vmatpush1.msra.mxu0 %v2379
        %2398 = vmatprep.subr.mxu0 0.0
        %2399 = vmatpush1.msra.mxu0 %v2378
        %2400 = vmatprep.subr.mxu0 0.0
        %2401 = vmatpush1.msra.mxu0 %v2377
        %2402 = vmatprep.subr.mxu0 0.0
        %2403 = vmatpush1.msra.mxu0 %v2376
        %2404 = vmatprep.subr.mxu0 0.0
        %2405 = vmatpush1.msra.mxu0 %v2375
        %2406 = vmatprep.subr.mxu0 0.0
        %2407 = vmatpush1.msra.mxu0 %v2374
        %2408 = vmatprep.subr.mxu0 0.0
        %2409 = vmatpush1.msra.mxu0 %v2373
        %2410 = vmatprep.subr.mxu0 0.0
        %2411 = vmatpush1.msra.mxu0 %v2372
        %2412 = vmatprep.subr.mxu0 0.0
        %2413 = vmatpush1.msra.mxu0 %v2371
        %2414 = vmatprep.subr.mxu0 0.0
        %2415 = vmatpush1.msra.mxu0 %v2370
        %2416 = vmatprep.subr.mxu0 0.0
        %2417 = vmatpush1.msra.mxu0 %v2369
        %2418 = vmatprep.subr.mxu0 0.0
        %2419 = vmatpush1.msra.mxu0 %v2368
        %2420 = vmatprep.subr.mxu0 0.0
        %2421 = vmatpush1.msra.mxu0 %v2367
        %2422 = vmatprep.subr.mxu0 0.0
        %2423 = vmatpush2.msra.mxu0 0.0
        %2424 = vmatprep.subr.mxu0 0.0
        %2425 = vmatpush2.msra.mxu0 0.0
        %2426 = vmatprep.subr.mxu0 0.0
        %2427 = vmatpush2.msra.mxu0 0.0
        %2428 = vmatprep.subr.mxu0 0.0
        %2429 = vmatpush2.msra.mxu0 0.0
        %2430 = vmatprep.subr.mxu0 0.0
        %2431 = vmatpush2.msra.mxu0 0.0
        %2432 = vmatprep.subr.mxu0 0.0
        %2433 = vmatpush2.msra.mxu0 0.0
        %2434 = vmatprep.subr.mxu0 0.0
        %2435 = vmatpush2.msra.mxu0 0.0
        %2436 = vmatprep.subr.mxu0 0.0
        %2437 = vmatpush2.msra.mxu0 0.0
        %2438 = vmatprep.subr.mxu0 0.0
        %2439 = vmatpush2.msra.mxu0 0.0
        %2440 = vmatprep.subr.mxu0 0.0
        %2441 = vmatpush2.msra.mxu0 0.0
        %2442 = vmatprep.subr.mxu0 0.0
        %2443 = vmatpush2.msra.mxu0 0.0
        %2444 = vmatprep.subr.mxu0 0.0
        %2445 = vmatpush2.msra.mxu0 0.0
        %2446 = vmatprep.subr.mxu0 0.0
        %2447 = vmatpush2.msra.mxu0 0.0
        %2448 = vmatprep.subr.mxu0 0.0
        %2449 = vmatpush2.msra.mxu0 0.0
        %2450 = vmatprep.subr.mxu0 0.0
        %2451 = vmatpush2.msra.mxu0 0.0
        %2452 = vmatprep.subr.mxu0 0.0
        %2453 = vmatpush2.msra.mxu0 0.0
        %2454 = vmatprep.mubr.f32.mxu0 0.0
        %2455 = vmatmul.mubr.f32.gmra.mxu0 %v2335
        %v2456 = vpop.f32.mrf.mxu0
        %v2457 = vadd.f32 %v2388, %v2456
        %v2458 = vpop.f32.mrf.mxu0
        %2459 = vmatprep.mubr.f32.mxu0 0.0
        %2460 = vmatmul.mubr.f32.gmra.mxu0 %v2336
        %v2461 = vpop.f32.mrf.mxu0
        %v2462 = vadd.f32 %v2388, %v2461
        %v2463 = vpop.f32.mrf.mxu0
        %2464 = vmatprep.mubr.f32.mxu0 0.0
        %2465 = vmatmul.mubr.f32.gmra.mxu0 %v2337
        %v2466 = vpop.f32.mrf.mxu0
        %v2467 = vadd.f32 %v2388, %v2466
        %v2468 = vpop.f32.mrf.mxu0
        %2469 = vmatprep.mubr.f32.mxu0 0.0
        %2470 = vmatmul.mubr.f32.gmra.mxu0 %v2338
        %v2471 = vpop.f32.mrf.mxu0
        %v2472 = vadd.f32 %v2388, %v2471
        %v2473 = vpop.f32.mrf.mxu0
        %2474 = vmatprep.mubr.f32.mxu0 0.0
        %2475 = vmatmul.mubr.f32.gmra.mxu0 %v2339
        %v2476 = vpop.f32.mrf.mxu0
        %v2477 = vadd.f32 %v2388, %v2476
        %v2478 = vpop.f32.mrf.mxu0
        %2479 = vmatprep.mubr.f32.mxu0 0.0
        %2480 = vmatmul.mubr.f32.gmra.mxu0 %v2340
        %v2481 = vpop.f32.mrf.mxu0
        %v2482 = vadd.f32 %v2388, %v2481
        %v2483 = vpop.f32.mrf.mxu0
        %2484 = vmatprep.mubr.f32.mxu0 0.0
        %2485 = vmatmul.mubr.f32.gmra.mxu0 %v2341
        %v2486 = vpop.f32.mrf.mxu0
        %v2487 = vadd.f32 %v2388, %v2486
        %v2488 = vpop.f32.mrf.mxu0
        %2489 = vmatprep.mubr.f32.mxu0 0.0
        %2490 = vmatmul.mubr.f32.gmra.mxu0 %v2342
        %v2491 = vpop.f32.mrf.mxu0
        %v2492 = vadd.f32 %v2388, %v2491
        %v2493 = vpop.f32.mrf.mxu0
        %2494 = vmatprep.mubr.f32.mxu0 0.0
        %2495 = vmatmul.mubr.f32.gmra.mxu0 %v2343
        %v2496 = vpop.f32.mrf.mxu0
        %v2497 = vadd.f32 %v2388, %v2496
        %v2498 = vpop.f32.mrf.mxu0
        %2499 = vmatprep.mubr.f32.mxu0 0.0
        %2500 = vmatmul.mubr.f32.gmra.mxu0 %v2344
        %v2501 = vpop.f32.mrf.mxu0
        %v2502 = vadd.f32 %v2388, %v2501
        %v2503 = vpop.f32.mrf.mxu0
        %2504 = vmatprep.mubr.f32.mxu0 0.0
        %2505 = vmatmul.mubr.f32.gmra.mxu0 %v2345
        %v2506 = vpop.f32.mrf.mxu0
        %v2507 = vadd.f32 %v2388, %v2506
        %v2508 = vpop.f32.mrf.mxu0
        %2509 = vmatprep.mubr.f32.mxu0 0.0
        %2510 = vmatmul.mubr.f32.gmra.mxu0 %v2346
        %v2511 = vpop.f32.mrf.mxu0
        %v2512 = vadd.f32 %v2388, %v2511
        %v2513 = vpop.f32.mrf.mxu0
        %2514 = vmatprep.mubr.f32.mxu0 0.0
        %2515 = vmatmul.mubr.f32.gmra.mxu0 %v2347
        %v2516 = vpop.f32.mrf.mxu0
        %v2517 = vadd.f32 %v2388, %v2516
        %v2518 = vpop.f32.mrf.mxu0
        %2519 = vmatprep.mubr.f32.mxu0 0.0
        %2520 = vmatmul.mubr.f32.gmra.mxu0 %v2348
        %v2521 = vpop.f32.mrf.mxu0
        %v2522 = vadd.f32 %v2388, %v2521
        %v2523 = vpop.f32.mrf.mxu0
        %2524 = vmatprep.mubr.f32.mxu0 0.0
        %2525 = vmatmul.mubr.f32.gmra.mxu0 %v2349
        %v2526 = vpop.f32.mrf.mxu0
        %v2527 = vadd.f32 %v2388, %v2526
        %v2528 = vpop.f32.mrf.mxu0
        %2529 = vmatprep.mubr.f32.mxu0 0.0
        %2530 = vmatmul.mubr.f32.gmra.mxu0 %v2350
        %v2531 = vpop.f32.mrf.mxu0
        %v2532 = vadd.f32 %v2388, %v2531
        %v2533 = vpop.f32.mrf.mxu0
        %2534 = vmatprep.mubr.f32.mxu0 0.0
        %2535 = vmatmul.mubr.f32.gmra.mxu0 %v2351
        %v2536 = vpop.f32.mrf.mxu0
        %v2537 = vadd.f32 %v2388, %v2536
        %v2538 = vpop.f32.mrf.mxu0
        %2539 = vmatprep.mubr.f32.mxu0 0.0
        %2540 = vmatmul.mubr.f32.gmra.mxu0 %v2352
        %v2541 = vpop.f32.mrf.mxu0
        %v2542 = vadd.f32 %v2388, %v2541
        %v2543 = vpop.f32.mrf.mxu0
        %2544 = vmatprep.mubr.f32.mxu0 0.0
        %2545 = vmatmul.mubr.f32.gmra.mxu0 %v2353
        %v2546 = vpop.f32.mrf.mxu0
        %v2547 = vadd.f32 %v2388, %v2546
        %v2548 = vpop.f32.mrf.mxu0
        %2549 = vmatprep.mubr.f32.mxu0 0.0
        %2550 = vmatmul.mubr.f32.gmra.mxu0 %v2354
        %v2551 = vpop.f32.mrf.mxu0
        %v2552 = vadd.f32 %v2388, %v2551
        %v2553 = vpop.f32.mrf.mxu0
        %2554 = vmatprep.mubr.f32.mxu0 0.0
        %2555 = vmatmul.mubr.f32.gmra.mxu0 %v2355
        %v2556 = vpop.f32.mrf.mxu0
        %v2557 = vadd.f32 %v2388, %v2556
        %v2558 = vpop.f32.mrf.mxu0
        %2559 = vmatprep.mubr.f32.mxu0 0.0
        %2560 = vmatmul.mubr.f32.gmra.mxu0 %v2356
        %v2561 = vpop.f32.mrf.mxu0
        %v2562 = vadd.f32 %v2388, %v2561
        %v2563 = vpop.f32.mrf.mxu0
        %2564 = vmatprep.mubr.f32.mxu0 0.0
        %2565 = vmatmul.mubr.f32.gmra.mxu0 %v2357
        %v2566 = vpop.f32.mrf.mxu0
        %v2567 = vadd.f32 %v2388, %v2566
        %v2568 = vpop.f32.mrf.mxu0
        %2569 = vmatprep.mubr.f32.mxu0 0.0
        %2570 = vmatmul.mubr.f32.gmra.mxu0 %v2358
        %v2571 = vpop.f32.mrf.mxu0
        %v2572 = vadd.f32 %v2388, %v2571
        %v2573 = vpop.f32.mrf.mxu0
        %2574 = vmatprep.mubr.f32.mxu0 0.0
        %2575 = vmatmul.mubr.f32.gmra.mxu0 %v2359
        %v2576 = vpop.f32.mrf.mxu0
        %v2577 = vadd.f32 %v2388, %v2576
        %v2578 = vpop.f32.mrf.mxu0
        %2579 = vmatprep.mubr.f32.mxu0 0.0
        %2580 = vmatmul.mubr.f32.gmra.mxu0 %v2360
        %v2581 = vpop.f32.mrf.mxu0
        %v2582 = vadd.f32 %v2388, %v2581
        %v2583 = vpop.f32.mrf.mxu0
        %2584 = vmatprep.mubr.f32.mxu0 0.0
        %2585 = vmatmul.mubr.f32.gmra.mxu0 %v2361
        %v2586 = vpop.f32.mrf.mxu0
        %v2587 = vadd.f32 %v2388, %v2586
        %v2588 = vpop.f32.mrf.mxu0
        %2589 = vmatprep.mubr.f32.mxu0 0.0
        %2590 = vmatmul.mubr.f32.gmra.mxu0 %v2362
        %v2591 = vpop.f32.mrf.mxu0
        %v2592 = vadd.f32 %v2388, %v2591
        %v2593 = vpop.f32.mrf.mxu0
        %2594 = vmatprep.mubr.f32.mxu0 0.0
        %2595 = vmatmul.mubr.f32.gmra.mxu0 %v2363
        %v2596 = vpop.f32.mrf.mxu0
        %v2597 = vadd.f32 %v2388, %v2596
        %v2598 = vpop.f32.mrf.mxu0
        %2599 = vmatprep.mubr.f32.mxu0 0.0
        %2600 = vmatmul.mubr.f32.gmra.mxu0 %v2364
        %v2601 = vpop.f32.mrf.mxu0
        %v2602 = vadd.f32 %v2388, %v2601
        %v2603 = vpop.f32.mrf.mxu0
        %2604 = vmatprep.mubr.f32.mxu0 0.0
        %2605 = vmatmul.mubr.f32.gmra.mxu0 %v2365
        %v2606 = vpop.f32.mrf.mxu0
        %v2607 = vadd.f32 %v2388, %v2606
        %v2608 = vpop.f32.mrf.mxu0
        %2609 = vmatprep.mubr.f32.mxu0 0.0
        %2610 = vmatmul.mubr.f32.gmra.mxu0 %v2366
        %v2611 = vpop.f32.mrf.mxu0
        %v2612 = vadd.f32 %v2388, %v2611
        %v2613 = vpop.f32.mrf.mxu0
        %2614 = vdwg.mxu0
        %v2615 = vmul.f32 %v2457, %v470
        %v2616 = vmul.f32 %v2462, %v471
        %v2617 = vmul.f32 %v2467, %v472
        %v2618 = vmul.f32 %v2472, %v473
        %v2619 = vmul.f32 %v2477, %v474
        %v2620 = vmul.f32 %v2482, %v475
        %v2621 = vmul.f32 %v2487, %v476
        %v2622 = vmul.f32 %v2492, %v477
        %v2623 = vmul.f32 %v2497, %v478
        %v2624 = vmul.f32 %v2502, %v479
        %v2625 = vmul.f32 %v2507, %v480
        %v2626 = vmul.f32 %v2512, %v481
        %v2627 = vmul.f32 %v2517, %v482
        %v2628 = vmul.f32 %v2522, %v483
        %v2629 = vmul.f32 %v2527, %v484
        %v2630 = vmul.f32 %v2532, %v485
        %v2631 = vmul.f32 %v2537, %v486
        %v2632 = vmul.f32 %v2542, %v487
        %v2633 = vmul.f32 %v2547, %v488
        %v2634 = vmul.f32 %v2552, %v489
        %v2635 = vmul.f32 %v2557, %v490
        %v2636 = vmul.f32 %v2562, %v491
        %v2637 = vmul.f32 %v2567, %v492
        %v2638 = vmul.f32 %v2572, %v493
        %v2639 = vmul.f32 %v2577, %v494
        %v2640 = vmul.f32 %v2582, %v495
        %v2641 = vmul.f32 %v2587, %v496
        %v2642 = vmul.f32 %v2592, %v497
        %v2643 = vmul.f32 %v2597, %v498
        %v2644 = vmul.f32 %v2602, %v499
        %v2645 = vmul.f32 %v2607, %v500
        %v2646 = vmul.f32 %v2612, %v501
        %2647 = vst [vmem:[%s469] sm:$0xff] %v2615
        %2648 = vst [vmem:[%s469 + $0x8] sm:$0xff] %v2616
        %2649 = vst [vmem:[%s469 + $0x10] sm:$0xff] %v2617
        %2650 = vst [vmem:[%s469 + $0x18] sm:$0xff] %v2618
        %2651 = vst [vmem:[%s469 + $0x20] sm:$0xff] %v2619
        %2652 = vst [vmem:[%s469 + $0x28] sm:$0xff] %v2620
        %2653 = vst [vmem:[%s469 + $0x30] sm:$0xff] %v2621
        %2654 = vst [vmem:[%s469 + $0x38] sm:$0xff] %v2622
        %2655 = vst [vmem:[%s469 + $0x40] sm:$0xff] %v2623
        %2656 = vst [vmem:[%s469 + $0x48] sm:$0xff] %v2624
        %2657 = vst [vmem:[%s469 + $0x50] sm:$0xff] %v2625
        %2658 = vst [vmem:[%s469 + $0x58] sm:$0xff] %v2626
        %2659 = vst [vmem:[%s469 + $0x60] sm:$0xff] %v2627
        %2660 = vst [vmem:[%s469 + $0x68] sm:$0xff] %v2628
        %2661 = vst [vmem:[%s469 + $0x70] sm:$0xff] %v2629
        %2662 = vst [vmem:[%s469 + $0x78] sm:$0xff] %v2630
        %2663 = vst [vmem:[%s469 + $0x80] sm:$0xff] %v2631
        %2664 = vst [vmem:[%s469 + $0x88] sm:$0xff] %v2632
        %2665 = vst [vmem:[%s469 + $0x90] sm:$0xff] %v2633
        %2666 = vst [vmem:[%s469 + $0x98] sm:$0xff] %v2634
        %2667 = vst [vmem:[%s469 + $0xa0] sm:$0xff] %v2635
        %2668 = vst [vmem:[%s469 + $0xa8] sm:$0xff] %v2636
        %2669 = vst [vmem:[%s469 + $0xb0] sm:$0xff] %v2637
        %2670 = vst [vmem:[%s469 + $0xb8] sm:$0xff] %v2638
        %2671 = vst [vmem:[%s469 + $0xc0] sm:$0xff] %v2639
        %2672 = vst [vmem:[%s469 + $0xc8] sm:$0xff] %v2640
        %2673 = vst [vmem:[%s469 + $0xd0] sm:$0xff] %v2641
        %2674 = vst [vmem:[%s469 + $0xd8] sm:$0xff] %v2642
        %2675 = vst [vmem:[%s469 + $0xe0] sm:$0xff] %v2643
        %2676 = vst [vmem:[%s469 + $0xe8] sm:$0xff] %v2644
        %2677 = vst [vmem:[%s469 + $0xf0] sm:$0xff] %v2645
        %2678 = vst [vmem:[%s469 + $0xf8] sm:$0xff] %v2646
        %s2679 = sand.u32 %s275, 1
        %s2680 = scalar_lea.sflag [#allocation4], %s2679
        %s2681 = sand.u32 %s275, 1
        %s2682 = smul.addr %s2681, 256
        %s2683 = scalar_lea.vmem [#allocation13], %s2682
        // Predicated region
        $region89: #{tpu_custom_call.1} parent=63 // pred_check
          %p2684 = pneg %p285
        $region90: #{tpu_custom_call.1} parent=63 // pred_check_branch
          %2686 = sbr.rel (%p2684) target = $region92
        $region91: #{tpu_custom_call.1} parent=63 // pred_region
          %s2688 = ssub.s32 4096, 4096
          %2689 = vsyncadd %s2680, %s2688
          %s2690 = smul.addr %s31, 32
          %s2691 = smul.addr %s2690, 128
          %s2692 = scalar_lea.hbm %s11, %s2691
          %s2693 = sshll.u32 %s2683, 4
          %s2694 = int_to_ptr.vmem [resolvable:$true] %s2693
          %2699 = dma.vmem_to_hbm [thread:$0]  %s2694, 4096, %s2692, %s2680, 128, 128, 8
        $region92: #{tpu_custom_call.1} parent=63 // pred_fallthru
          _
      $region64: #{tpu_custom_call.1} parent=5 // pred_fallthru
        _
      %p2700 = scmp.le.s32.totalorder 2, %s26
      // Predicated region
      $region93: #{tpu_custom_call.1} parent=5 // pred_check
        %p2701 = pneg %p2700
      $region94: #{tpu_custom_call.1} parent=5 // pred_check_branch
        %2703 = sbr.rel (%p2701) target = $region96
      $region95: #{tpu_custom_call.1} parent=5 // pred_region
        %s2704 = ssub.s32 %s26, 2
        // Predicated region
        $region97: #{tpu_custom_call.1} parent=95 // pred_check
          %p2705 = pneg %p291
        $region98: #{tpu_custom_call.1} parent=95 // pred_check_branch
          %2707 = sbr.rel (%p2705) target = $region100
        $region99: #{tpu_custom_call.1} parent=95 // pred_region
          %s2708 = sand.u32 %s276, 1
          %s2709 = scalar_lea.sflag [#allocation4], %s2708
          %s2710 = sand.u32 %s276, 1
          %s2711 = smul.addr %s2710, 256
          %s2712 = scalar_lea.vmem [#allocation13], %s2711
          %2713 = dma.done %s2709, 4096
        $region100: #{tpu_custom_call.1} parent=95 // pred_fallthru
          _
      $region96: #{tpu_custom_call.1} parent=5 // pred_fallthru
        _
    $region6: #{tpu_custom_call.1} parent=1 // loop_footer
      %s30 = sadd.s32 1, %s26
    $region7: #{tpu_custom_call.1} parent=1 // loop_footer_branch
      %25 = sbr.rel target = $region3
    $region8: #{tpu_custom_call.1} parent=1 // loop_exit
      _
    %2714 = vsyncpa [#allocation3], 1
    %s2715 = scalar_lea.sflag [#allocation3], 1
    %2716 = vsyncpa %s2715, 1
    %2717 = vsyncpa [#allocation6], 1
    %2718 = vsyncpa [#allocation9], 1
    %2719 = vsyncpa [#allocation12], 1
    %2720 = vsyncpa [#allocation4], 1
    %s2721 = scalar_lea.sflag [#allocation4], 1
    %2722 = vsyncpa %s2721, 1

</llo_original>
